<compile_context>
chip_gen: v7x
topology: tpu7x:2x2x1
jax: 0.10.0
libtpu: 0.0.40
codegen_flags: <defaults>
</compile_context>

<pallas_src>
import jax
import jax.numpy as jnp
from jax import lax
from jax.experimental import pallas as pl
from jax.experimental.pallas import tpu as pltpu


def _nonlocal_kernel(xq_ref, xk_ref, invd_ref, wq_ref, wk_ref, wv_ref,
                     wu_ref, bias_ref, o_ref, q_sc, m_sc, l_sc, acc_sc):
    # Block shapes seen by the kernel:
    #   xq_ref  : (TQ, C)  f32   query-side x tile (also the residual identity)
    #   xk_ref  : (TK, C)  f32   key/value-side x tile
    #   invd_ref: (TQ, TK) f32   1 / distance tile
    #   wq_ref  : (C, Ci)  bf16 | wk_ref: (C, Ci) bf16 | wv_ref: (C, C) bf16
    #   wu_ref  : (C, C)   bf16  (BN scale folded in)
    #   bias_ref: (1, C)   f32   folded BN bias
    #   o_ref   : (TQ, C)  f32
    # Scratch (persist across the ki reduction):
    #   q_sc (TQ, Ci) f32 | m_sc (TQ, 1) f32 | l_sc (TQ, 1) f32 | acc_sc (TQ, C) f32
    ki = pl.program_id(2)

    @pl.when(ki == 0)
    def _init():
        xq_bf = xq_ref[...].astype(jnp.bfloat16)
        q_sc[...] = jnp.dot(xq_bf, wq_ref[...],
                            preferred_element_type=jnp.float32)
        m_sc[...] = jnp.full(m_sc.shape, -jnp.inf, m_sc.dtype)
        l_sc[...] = jnp.zeros(l_sc.shape, l_sc.dtype)
        acc_sc[...] = jnp.zeros(acc_sc.shape, acc_sc.dtype)

    # k / v 1x1-conv projections for this key tile (channel matmuls on the MXU).
    xk_bf = xk_ref[...].astype(jnp.bfloat16)
    k = jnp.dot(xk_bf, wk_ref[...],
                preferred_element_type=jnp.float32).astype(jnp.bfloat16)
    v = jnp.dot(xk_bf, wv_ref[...],
                preferred_element_type=jnp.float32).astype(jnp.bfloat16)

    # scores = (q @ k^T) / distance  (element-wise scale by precomputed 1/dist)
    q_bf = q_sc[...].astype(jnp.bfloat16)
    s = lax.dot_general(q_bf, k, (((1,), (1,)), ((), ())),
                        preferred_element_type=jnp.float32)      # (TQ, TK)
    s = s * invd_ref[...]

    # online softmax over the key axis
    m_prev = m_sc[...]
    m_new = jnp.maximum(m_prev, s.max(axis=-1, keepdims=True))
    alpha = jnp.exp(m_prev - m_new)
    p = jnp.exp(s - m_new)
    l_sc[...] = alpha * l_sc[...] + p.sum(axis=-1, keepdims=True)
    acc_sc[...] = alpha * acc_sc[...] + jnp.dot(
        p.astype(jnp.bfloat16), v, preferred_element_type=jnp.float32)
    m_sc[...] = m_new

    @pl.when(ki == pl.num_programs(2) - 1)
    def _finalize():
        y = acc_sc[...] / l_sc[...]                              # (TQ, C) f32
        z = jnp.dot(y.astype(jnp.bfloat16), wu_ref[...],
                    preferred_element_type=jnp.float32)          # w_upper (+BN scale)
        out = jnp.maximum(z + bias_ref[...] + xq_ref[...], 0.0)  # +bias, +residual, ReLU
        o_ref[...] = out.astype(o_ref.dtype)


def nonlocal_block_forward(x_nchw, params, eps=1e-5, tq=128, tk=128):
    """x_nchw: (B, C, H, W) f32. Returns (B, C, H, W) f32."""
    w_v, w_q, w_k, w_u = params["w_v"], params["w_q"], params["w_k"], params["w_u"]
    gamma, beta = params["bn_g"], params["bn_b"]
    mean, var = params["bn_m"], params["bn_v"]
    dist = params["distance"]

    B, C, H, W = x_nchw.shape
    L = H * W
    Ci = C // 4
    assert Ci >= 1 and dist.shape == (L, L)

    tq, tk = min(tq, L), min(tk, L)
    assert L % tq == 0 and L % tk == 0
    assert tq == L or tq % 8 == 0
    assert tk == L or tk % 128 == 0

    # ---- host-side packing (pure layout / tiny folds, no heavy compute) ----
    # 1x1 conv weights (O, I, 1, 1) -> (Cin, Cout) matmul form, bf16 for the MXU.
    wq_m = jnp.transpose(w_q.reshape(Ci, C)).astype(jnp.bfloat16)       # (C, Ci)
    wk_m = jnp.transpose(w_k.reshape(Ci, C)).astype(jnp.bfloat16)       # (C, Ci)
    wv_m = jnp.transpose(w_v.reshape(C, C)).astype(jnp.bfloat16)        # (C, C)
    # fold eval-mode BN scale into w_upper; keep only the bias add in-kernel.
    scale = gamma / jnp.sqrt(var + eps)
    wu_m = (jnp.transpose(w_u.reshape(C, C)) * scale[None, :]).astype(jnp.bfloat16)
    bias = (beta - mean * scale).reshape(1, C).astype(jnp.float32)

    # NCHW -> (B, L, C): channels land on the 128-lane axis.
    x_flat = jnp.transpose(x_nchw, (0, 2, 3, 1)).reshape(B, L, C).astype(jnp.float32)
    inv_dist = (1.0 / dist).astype(jnp.float32)   # divide -> multiply in-kernel

    nq, nk = L // tq, L // tk
    grid = (B, nq, nk)

    def full(shape):
        return pl.BlockSpec(shape, lambda b, qi, ki: (0,) * len(shape))

    in_specs = [
        pl.BlockSpec((None, tq, C), lambda b, qi, ki: (b, qi, 0)),   # x, query view
        pl.BlockSpec((None, tk, C), lambda b, qi, ki: (b, ki, 0)),   # x, key view
        pl.BlockSpec((tq, tk), lambda b, qi, ki: (qi, ki)),          # 1/distance
        full((C, Ci)), full((C, Ci)), full((C, C)), full((C, C)),    # wq wk wv wu
        full((1, C)),                                                # folded BN bias
    ]
    out_specs = pl.BlockSpec((None, tq, C), lambda b, qi, ki: (b, qi, 0))

    flops = int(
        B * nq * L * 2 * C * (Ci + C)      # k/v projections (recomputed per q-tile)
        + B * L * 2 * C * Ci               # q projection
        + B * L * L * 2 * (Ci + C)         # scores + rel @ v
        + B * L * 2 * C * C)               # w_upper
    cost = pl.CostEstimate(
        flops=flops,
        transcendentals=int(B * L * L + B * L * nk),
        bytes_accessed=int(B * L * L * 4 + B * L * C * 4 * (2 + nq)
                           + (2 * C * Ci + 2 * C * C + C) * 4))

    out_flat = pl.pallas_call(
        _nonlocal_kernel,
        out_shape=jax.ShapeDtypeStruct((B, L, C), jnp.float32),
        grid=grid,
        in_specs=in_specs,
        out_specs=out_specs,
        scratch_shapes=[
            pltpu.VMEM((tq, Ci), jnp.float32),   # cached q projection
            pltpu.VMEM((tq, 1), jnp.float32),    # running max
            pltpu.VMEM((tq, 1), jnp.float32),    # running denom
            pltpu.VMEM((tq, C), jnp.float32),    # output accumulator
        ],
        compiler_params=pltpu.CompilerParams(
            dimension_semantics=("parallel", "parallel", "arbitrary")),
        cost_estimate=cost,
    )(x_flat, x_flat, inv_dist, wq_m, wk_m, wv_m, wu_m, bias)

    return jnp.transpose(out_flat.reshape(B, H, W, C), (0, 3, 1, 2))


def gen_distance(h, w):
    # Stand-in for utils.gen_distance: Euclidean pixel distance + 1 (positive).
    ys, xs = jnp.meshgrid(jnp.arange(h, dtype=jnp.float32),
                          jnp.arange(w, dtype=jnp.float32), indexing="ij")
    coords = jnp.stack([ys.ravel(), xs.ravel()], axis=-1)          # (L, 2)
    d = jnp.sqrt(jnp.sum((coords[:, None, :] - coords[None, :, :]) ** 2, axis=-1))
    return d + 1.0


def nonlocal_block_reference(x, params, eps=1e-5):
    """Pure-JAX f32 reference with identical (eval-mode BN) semantics."""
    B, C, H, W = x.shape
    L = H * W
    xf = x.reshape(B, C, L)

    def conv1x1(z, w):                      # w: (O, I, 1, 1), z: (B, I, L)
        return jnp.einsum('oi,bil->bol', w.reshape(w.shape[0], w.shape[1]), z)

    v = conv1x1(xf, params["w_v"]).transpose(0, 2, 1)     # (B, L, C)
    q = conv1x1(xf, params["w_q"]).transpose(0, 2, 1)     # (B, L, Ci)
    k = conv1x1(xf, params["w_k"])                        # (B, Ci, L)
    rel = jnp.einsum('blc,bcm->blm', q, k) / params["distance"][None]
    rel = jax.nn.softmax(rel, axis=-1)
    y = jnp.einsum('blm,bmc->blc', rel, v)                # (B, L, C)
    z = conv1x1(y.transpose(0, 2, 1), params["w_u"])      # (B, C, L)
    s = params["bn_g"] / jnp.sqrt(params["bn_v"] + eps)
    z = z * s[None, :, None] + (params["bn_b"] - params["bn_m"] * s)[None, :, None]
    return jnp.maximum(z.reshape(B, C, H, W) + x, 0.0)


if __name__ == "__main__":
    # in_channels=8 -> inter_channels=2; spatial 16x16 -> L=256 (distance 256x256)
    B, C, H, W = 2, 8, 16, 16
    Ci = C // 4
    key = jax.random.PRNGKey(0)
    ks = jax.random.split(key, 7)

    x = jax.random.normal(ks[0], (B, C, H, W), jnp.float32)
    params = {
        "w_v": 0.1 * jax.random.normal(ks[1], (C, C, 1, 1), jnp.float32),
        "w_q": 0.1 * jax.random.normal(ks[2], (Ci, C, 1, 1), jnp.float32),
        "w_k": 0.1 * jax.random.normal(ks[3], (Ci, C, 1, 1), jnp.float32),
        "w_u": 0.1 * jax.random.normal(ks[4], (C, C, 1, 1), jnp.float32),
        "bn_g": 1.0 + 0.1 * jax.random.normal(ks[5], (C,), jnp.float32),
        "bn_b": 0.1 * jax.random.normal(ks[6], (C,), jnp.float32),
        # fresh nn.BatchNorm2d running stats (eval mode)
        "bn_m": jnp.zeros((C,), jnp.float32),
        "bn_v": jnp.ones((C,), jnp.float32),
        "distance": gen_distance(H, W),
    }

    out = jax.block_until_ready(nonlocal_block_forward(x, params))
    ref = jax.block_until_ready(nonlocal_block_reference(x, params))

    assert out.shape == (B, C, H, W)
    max_err = float(jnp.max(jnp.abs(out - ref)))
    assert jnp.allclose(out, ref, atol=2e-2, rtol=2e-2), f"mismatch vs reference: {max_err}"

    print("KERNEL_OK")
</pallas_src>

<mosaic_0001>
module attributes {stable_mosaic.version = 11 : i64} {
  func.func @_nonlocal_kernel(%arg0: i32, %arg1: i32, %arg2: i32, %arg3: memref<1x128x8xf32, #tpu.memory_space<vmem>>, %arg4: memref<1x128x8xf32, #tpu.memory_space<vmem>>, %arg5: memref<128x128xf32, #tpu.memory_space<vmem>>, %arg6: memref<8x2xbf16, #tpu.memory_space<vmem>>, %arg7: memref<8x2xbf16, #tpu.memory_space<vmem>>, %arg8: memref<8x8xbf16, #tpu.memory_space<vmem>>, %arg9: memref<8x8xbf16, #tpu.memory_space<vmem>>, %arg10: memref<1x8xf32, #tpu.memory_space<vmem>>, %arg11: memref<1x128x8xf32, #tpu.memory_space<vmem>>, %arg12: memref<128x2xf32, #tpu.memory_space<vmem>>, %arg13: memref<128x1xf32, #tpu.memory_space<vmem>>, %arg14: memref<128x1xf32, #tpu.memory_space<vmem>>, %arg15: memref<128x8xf32, #tpu.memory_space<vmem>>) attributes {dimension_semantics = [#tpu.dimension_semantics<parallel>, #tpu.dimension_semantics<parallel>, #tpu.dimension_semantics<arbitrary>], iteration_bounds = array<i64: 2, 2, 2>, scalar_prefetch = 0 : i64, scratch_operands = 4 : i64, tpu.core_type = #tpu.core_type<tc>, window_params = [{transform_indices = @transform_0, window_bounds = array<i64: 1, 128, 8>}, {transform_indices = @transform_1, window_bounds = array<i64: 1, 128, 8>}, {transform_indices = @transform_2, window_bounds = array<i64: 128, 128>}, {pipeline_mode = #tpu.pipeline_mode<synchronous>, transform_indices = @transform_3, window_bounds = array<i64: 8, 2>}, {pipeline_mode = #tpu.pipeline_mode<synchronous>, transform_indices = @transform_4, window_bounds = array<i64: 8, 2>}, {pipeline_mode = #tpu.pipeline_mode<synchronous>, transform_indices = @transform_5, window_bounds = array<i64: 8, 8>}, {pipeline_mode = #tpu.pipeline_mode<synchronous>, transform_indices = @transform_6, window_bounds = array<i64: 8, 8>}, {pipeline_mode = #tpu.pipeline_mode<synchronous>, transform_indices = @transform_7, window_bounds = array<i64: 1, 8>}, {transform_indices = @transform_8, window_bounds = array<i64: 1, 128, 8>}]} {
    %c0_i32 = arith.constant 0 : i32
    %0 = arith.cmpi eq, %arg2, %c0_i32 : i32
    %1 = arith.extui %0 : i1 to i32
    %c0_i32_0 = arith.constant 0 : i32
    %2 = arith.cmpi ne, %1, %c0_i32_0 : i32
    scf.if %2 {
      %c0_29 = arith.constant 0 : index
      %c0_30 = arith.constant 0 : index
      %c0_31 = arith.constant 0 : index
      %43 = vector.load %arg3[%c0_29, %c0_30, %c0_31] : memref<1x128x8xf32, #tpu.memory_space<vmem>>, vector<1x128x8xf32>
      %44 = vector.shape_cast %43 : vector<1x128x8xf32> to vector<128x8xf32>
      %45 = arith.truncf %44 : vector<128x8xf32> to vector<128x8xbf16>
      %c0_32 = arith.constant 0 : index
      %c0_33 = arith.constant 0 : index
      %46 = vector.load %arg6[%c0_32, %c0_33] : memref<8x2xbf16, #tpu.memory_space<vmem>>, vector<8x2xbf16>
      %cst_34 = arith.constant dense<0.000000e+00> : vector<128x2xf32>
      %47 = tpu.matmul %45, %46, %cst_34 {dimension_numbers = #tpu.dot_dimension_numbers<[1], [0], [0], [1], [0, 0, 1, 1], [], []>} : vector<128x8xbf16>, vector<8x2xbf16>, vector<128x2xf32> -> vector<128x2xf32>
      %c0_35 = arith.constant 0 : index
      %c0_36 = arith.constant 0 : index
      %48 = vector.load %arg12[%c0_35, %c0_36] : memref<128x2xf32, #tpu.memory_space<vmem>>, vector<128x2xf32>
      tpu.vector_store %arg12[%c0_35, %c0_36], %47 {strides = array<i32>} : memref<128x2xf32, #tpu.memory_space<vmem>>, vector<128x2xf32>,
      %cst_37 = arith.constant 0xFF800000 : f32
      %49 = vector.broadcast %cst_37 : f32 to vector<128x1xf32>
      %c0_38 = arith.constant 0 : index
      %c0_39 = arith.constant 0 : index
      %50 = vector.load %arg13[%c0_38, %c0_39] : memref<128x1xf32, #tpu.memory_space<vmem>>, vector<128x1xf32>
      tpu.vector_store %arg13[%c0_38, %c0_39], %49 {strides = array<i32>} : memref<128x1xf32, #tpu.memory_space<vmem>>, vector<128x1xf32>,
      %cst_40 = arith.constant 0.000000e+00 : f32
      %51 = vector.broadcast %cst_40 : f32 to vector<128x1xf32>
      %c0_41 = arith.constant 0 : index
      %c0_42 = arith.constant 0 : index
      %52 = vector.load %arg14[%c0_41, %c0_42] : memref<128x1xf32, #tpu.memory_space<vmem>>, vector<128x1xf32>
      tpu.vector_store %arg14[%c0_41, %c0_42], %51 {strides = array<i32>} : memref<128x1xf32, #tpu.memory_space<vmem>>, vector<128x1xf32>,
      %cst_43 = arith.constant 0.000000e+00 : f32
      %53 = vector.broadcast %cst_43 : f32 to vector<128x8xf32>
      %c0_44 = arith.constant 0 : index
      %c0_45 = arith.constant 0 : index
      %54 = vector.load %arg15[%c0_44, %c0_45] : memref<128x8xf32, #tpu.memory_space<vmem>>, vector<128x8xf32>
      tpu.vector_store %arg15[%c0_44, %c0_45], %53 {strides = array<i32>} : memref<128x8xf32, #tpu.memory_space<vmem>>, vector<128x8xf32>,
    } else {
    }
    %c0 = arith.constant 0 : index
    %c0_1 = arith.constant 0 : index
    %c0_2 = arith.constant 0 : index
    %3 = vector.load %arg4[%c0, %c0_1, %c0_2] : memref<1x128x8xf32, #tpu.memory_space<vmem>>, vector<1x128x8xf32>
    %4 = vector.shape_cast %3 : vector<1x128x8xf32> to vector<128x8xf32>
    %5 = arith.truncf %4 : vector<128x8xf32> to vector<128x8xbf16>
    %c0_3 = arith.constant 0 : index
    %c0_4 = arith.constant 0 : index
    %6 = vector.load %arg7[%c0_3, %c0_4] : memref<8x2xbf16, #tpu.memory_space<vmem>>, vector<8x2xbf16>
    %cst = arith.constant dense<0.000000e+00> : vector<128x2xf32>
    %7 = tpu.matmul %5, %6, %cst {dimension_numbers = #tpu.dot_dimension_numbers<[1], [0], [0], [1], [0, 0, 1, 1], [], []>} : vector<128x8xbf16>, vector<8x2xbf16>, vector<128x2xf32> -> vector<128x2xf32>
    %8 = arith.truncf %7 : vector<128x2xf32> to vector<128x2xbf16>
    %c0_5 = arith.constant 0 : index
    %c0_6 = arith.constant 0 : index
    %9 = vector.load %arg8[%c0_5, %c0_6] : memref<8x8xbf16, #tpu.memory_space<vmem>>, vector<8x8xbf16>
    %cst_7 = arith.constant dense<0.000000e+00> : vector<128x8xf32>
    %10 = tpu.matmul %5, %9, %cst_7 {dimension_numbers = #tpu.dot_dimension_numbers<[1], [0], [0], [1], [0, 0, 1, 1], [], []>} : vector<128x8xbf16>, vector<8x8xbf16>, vector<128x8xf32> -> vector<128x8xf32>
    %11 = arith.truncf %10 : vector<128x8xf32> to vector<128x8xbf16>
    %c0_8 = arith.constant 0 : index
    %c0_9 = arith.constant 0 : index
    %12 = vector.load %arg12[%c0_8, %c0_9] : memref<128x2xf32, #tpu.memory_space<vmem>>, vector<128x2xf32>
    %13 = arith.truncf %12 : vector<128x2xf32> to vector<128x2xbf16>
    %cst_10 = arith.constant dense<0.000000e+00> : vector<128x128xf32>
    %14 = tpu.matmul %13, %8, %cst_10 {dimension_numbers = #tpu.dot_dimension_numbers<[1], [1], [0], [0], [0, 0, 1, 0], [], []>} : vector<128x2xbf16>, vector<128x2xbf16>, vector<128x128xf32> -> vector<128x128xf32>
    %c0_11 = arith.constant 0 : index
    %c0_12 = arith.constant 0 : index
    %15 = vector.load %arg5[%c0_11, %c0_12] : memref<128x128xf32, #tpu.memory_space<vmem>>, vector<128x128xf32>
    %16 = arith.mulf %14, %15 : vector<128x128xf32>
    %c0_13 = arith.constant 0 : index
    %c0_14 = arith.constant 0 : index
    %17 = vector.load %arg13[%c0_13, %c0_14] : memref<128x1xf32, #tpu.memory_space<vmem>>, vector<128x1xf32>
    %cst_15 = arith.constant dense<0xFF800000> : vector<128xf32>
    %18 = vector.multi_reduction <maximumf>, %16, %cst_15 [1] : vector<128x128xf32> to vector<128xf32>
    %19 = vector.shape_cast %18 : vector<128xf32> to vector<128x1xf32>
    %20 = arith.maximumf %17, %19 : vector<128x1xf32>
    %21 = arith.subf %17, %20 : vector<128x1xf32>
    %22 = math.exp %21 : vector<128x1xf32>
    %23 = vector.broadcast %20 : vector<128x1xf32> to vector<128x128xf32>
    %24 = arith.subf %16, %23 : vector<128x128xf32>
    %25 = math.exp %24 : vector<128x128xf32>
    %c0_16 = arith.constant 0 : index
    %c0_17 = arith.constant 0 : index
    %26 = vector.load %arg14[%c0_16, %c0_17] : memref<128x1xf32, #tpu.memory_space<vmem>>, vector<128x1xf32>
    %27 = arith.mulf %22, %26 : vector<128x1xf32>
    %cst_18 = arith.constant dense<0.000000e+00> : vector<128xf32>
    %28 = vector.multi_reduction <add>, %25, %cst_18 [1] : vector<128x128xf32> to vector<128xf32>
    %29 = vector.shape_cast %28 : vector<128xf32> to vector<128x1xf32>
    %30 = arith.addf %27, %29 : vector<128x1xf32>
    %c0_19 = arith.constant 0 : index
    %c0_20 = arith.constant 0 : index
    %31 = vector.load %arg14[%c0_19, %c0_20] : memref<128x1xf32, #tpu.memory_space<vmem>>, vector<128x1xf32>
    tpu.vector_store %arg14[%c0_19, %c0_20], %30 {strides = array<i32>} : memref<128x1xf32, #tpu.memory_space<vmem>>, vector<128x1xf32>,
    %c0_21 = arith.constant 0 : index
    %c0_22 = arith.constant 0 : index
    %32 = vector.load %arg15[%c0_21, %c0_22] : memref<128x8xf32, #tpu.memory_space<vmem>>, vector<128x8xf32>
    %33 = vector.broadcast %22 : vector<128x1xf32> to vector<128x8xf32>
    %34 = arith.mulf %33, %32 : vector<128x8xf32>
    %35 = arith.truncf %25 : vector<128x128xf32> to vector<128x128xbf16>
    %cst_23 = arith.constant dense<0.000000e+00> : vector<128x8xf32>
    %36 = tpu.matmul %35, %11, %cst_23 {dimension_numbers = #tpu.dot_dimension_numbers<[1], [0], [0], [1], [0, 0, 1, 1], [], []>} : vector<128x128xbf16>, vector<128x8xbf16>, vector<128x8xf32> -> vector<128x8xf32>
    %37 = arith.addf %34, %36 : vector<128x8xf32>
    %c0_24 = arith.constant 0 : index
    %c0_25 = arith.constant 0 : index
    %38 = vector.load %arg15[%c0_24, %c0_25] : memref<128x8xf32, #tpu.memory_space<vmem>>, vector<128x8xf32>
    tpu.vector_store %arg15[%c0_24, %c0_25], %37 {strides = array<i32>} : memref<128x8xf32, #tpu.memory_space<vmem>>, vector<128x8xf32>,
    %c0_26 = arith.constant 0 : index
    %c0_27 = arith.constant 0 : index
    %39 = vector.load %arg13[%c0_26, %c0_27] : memref<128x1xf32, #tpu.memory_space<vmem>>, vector<128x1xf32>
    tpu.vector_store %arg13[%c0_26, %c0_27], %20 {strides = array<i32>} : memref<128x1xf32, #tpu.memory_space<vmem>>, vector<128x1xf32>,
    %c1_i32 = arith.constant 1 : i32
    %40 = arith.cmpi eq, %arg2, %c1_i32 : i32
    %41 = arith.extui %40 : i1 to i32
    %c0_i32_28 = arith.constant 0 : i32
    %42 = arith.cmpi ne, %41, %c0_i32_28 : i32
    scf.if %42 {
      %c0_29 = arith.constant 0 : index
      %c0_30 = arith.constant 0 : index
      %43 = vector.load %arg15[%c0_29, %c0_30] : memref<128x8xf32, #tpu.memory_space<vmem>>, vector<128x8xf32>
      %c0_31 = arith.constant 0 : index
      %c0_32 = arith.constant 0 : index
      %44 = vector.load %arg14[%c0_31, %c0_32] : memref<128x1xf32, #tpu.memory_space<vmem>>, vector<128x1xf32>
      %45 = vector.broadcast %44 : vector<128x1xf32> to vector<128x8xf32>
      %46 = arith.divf %43, %45 : vector<128x8xf32>
      %47 = arith.truncf %46 : vector<128x8xf32> to vector<128x8xbf16>
      %c0_33 = arith.constant 0 : index
      %c0_34 = arith.constant 0 : index
      %48 = vector.load %arg9[%c0_33, %c0_34] : memref<8x8xbf16, #tpu.memory_space<vmem>>, vector<8x8xbf16>
      %cst_35 = arith.constant dense<0.000000e+00> : vector<128x8xf32>
      %49 = tpu.matmul %47, %48, %cst_35 {dimension_numbers = #tpu.dot_dimension_numbers<[1], [0], [0], [1], [0, 0, 1, 1], [], []>} : vector<128x8xbf16>, vector<8x8xbf16>, vector<128x8xf32> -> vector<128x8xf32>
      %c0_36 = arith.constant 0 : index
      %c0_37 = arith.constant 0 : index
      %50 = vector.load %arg10[%c0_36, %c0_37] : memref<1x8xf32, #tpu.memory_space<vmem>>, vector<1x8xf32>
      %51 = vector.broadcast %50 : vector<1x8xf32> to vector<128x8xf32>
      %52 = arith.addf %49, %51 : vector<128x8xf32>
      %c0_38 = arith.constant 0 : index
      %c0_39 = arith.constant 0 : index
      %c0_40 = arith.constant 0 : index
      %53 = vector.load %arg3[%c0_38, %c0_39, %c0_40] : memref<1x128x8xf32, #tpu.memory_space<vmem>>, vector<1x128x8xf32>
      %54 = vector.shape_cast %53 : vector<1x128x8xf32> to vector<128x8xf32>
      %55 = arith.addf %52, %54 : vector<128x8xf32>
      %cst_41 = arith.constant 0.000000e+00 : f32
      %56 = vector.broadcast %cst_41 : f32 to vector<128x8xf32>
      %57 = arith.maximumf %55, %56 : vector<128x8xf32>
      %c0_42 = arith.constant 0 : index
      %c0_43 = arith.constant 0 : index
      %c0_44 = arith.constant 0 : index
      %58 = vector.load %arg11[%c0_42, %c0_43, %c0_44] : memref<1x128x8xf32, #tpu.memory_space<vmem>>, vector<1x128x8xf32>
      %59 = vector.shape_cast %58 : vector<1x128x8xf32> to vector<128x8xf32>
      %60 = vector.shape_cast %57 : vector<128x8xf32> to vector<1x128x8xf32>
      tpu.vector_store %arg11[%c0_42, %c0_43, %c0_44], %60 {strides = array<i32>} : memref<1x128x8xf32, #tpu.memory_space<vmem>>, vector<1x128x8xf32>,
    } else {
    }
    return
  }
  func.func @transform_0(%arg0: i32, %arg1: i32, %arg2: i32) -> (i32, i32, i32) {
    %c0_i32 = arith.constant 0 : i32
    %c0_i32_0 = arith.constant 0 : i32
    return %arg0, %arg1, %c0_i32 : i32, i32, i32
  }
  func.func @transform_1(%arg0: i32, %arg1: i32, %arg2: i32) -> (i32, i32, i32) {
    %c0_i32 = arith.constant 0 : i32
    %c0_i32_0 = arith.constant 0 : i32
    return %arg0, %arg2, %c0_i32 : i32, i32, i32
  }
  func.func @transform_2(%arg0: i32, %arg1: i32, %arg2: i32) -> (i32, i32) {
    %c0_i32 = arith.constant 0 : i32
    return %arg1, %arg2 : i32, i32
  }
  func.func @transform_3(%arg0: i32, %arg1: i32, %arg2: i32) -> (i32, i32) {
    %c0_i32 = arith.constant 0 : i32
    %c0_i32_0 = arith.constant 0 : i32
    %c0_i32_1 = arith.constant 0 : i32
    return %c0_i32, %c0_i32_0 : i32, i32
  }
  func.func @transform_4(%arg0: i32, %arg1: i32, %arg2: i32) -> (i32, i32) {
    %c0_i32 = arith.constant 0 : i32
    %c0_i32_0 = arith.constant 0 : i32
    %c0_i32_1 = arith.constant 0 : i32
    return %c0_i32, %c0_i32_0 : i32, i32
  }
  func.func @transform_5(%arg0: i32, %arg1: i32, %arg2: i32) -> (i32, i32) {
    %c0_i32 = arith.constant 0 : i32
    %c0_i32_0 = arith.constant 0 : i32
    %c0_i32_1 = arith.constant 0 : i32
    return %c0_i32, %c0_i32_0 : i32, i32
  }
  func.func @transform_6(%arg0: i32, %arg1: i32, %arg2: i32) -> (i32, i32) {
    %c0_i32 = arith.constant 0 : i32
    %c0_i32_0 = arith.constant 0 : i32
    %c0_i32_1 = arith.constant 0 : i32
    return %c0_i32, %c0_i32_0 : i32, i32
  }
  func.func @transform_7(%arg0: i32, %arg1: i32, %arg2: i32) -> (i32, i32) {
    %c0_i32 = arith.constant 0 : i32
    %c0_i32_0 = arith.constant 0 : i32
    %c0_i32_1 = arith.constant 0 : i32
    return %c0_i32, %c0_i32_0 : i32, i32
  }
  func.func @transform_8(%arg0: i32, %arg1: i32, %arg2: i32) -> (i32, i32, i32) {
    %c0_i32 = arith.constant 0 : i32
    %c0_i32_0 = arith.constant 0 : i32
    return %arg0, %arg1, %c0_i32 : i32, i32, i32
  }
}

</mosaic_0001>

<llo_original>
// kernel: tpu_custom_call.1
$region0: #{tpu_custom_call.1}
  #allocation0 [shape = 'u32[]', space=smem, size = 0x4, offset = 0x4, fixed_abs, tag = 'smem constant byte address 0x4 - core index']
  #allocation1 [shape = 'u32[144,128]{1,0:T(1,128)}', space=vmem, size = 0x12000, scoped, tag = 'internal scratch']
  #allocation2 [shape = 'f32[128,2]{1,0:T(8,128)}', space=vmem, size = 0x10000, scoped, tag = 'scratch operand']
  #allocation3 [shape = 'f32[128,1]{1,0:T(8,128)}', space=vmem, size = 0x10000, scoped, tag = 'scratch operand']
  #allocation4 [shape = 'f32[128,1]{1,0:T(8,128)}', space=vmem, size = 0x10000, scoped, tag = 'scratch operand']
  #allocation5 [shape = 'f32[128,8]{1,0:T(8,128)}', space=vmem, size = 0x10000, scoped, tag = 'scratch operand']
  %s0 = inlined_call_operand.vmem [shape: f32[2,256,8], index: 0, kind: input, shape index: {}]
  %s1 = inlined_call_operand.vmem [shape: f32[2,256,8], index: 1, kind: input, shape index: {}]
  %s2 = inlined_call_operand.vmem [shape: f32[256,256], index: 2, kind: input, shape index: {}]
  %s3 = inlined_call_operand.vmem [shape: bf16[8,2], index: 3, kind: input, shape index: {}]
  %s4 = inlined_call_operand.vmem [shape: bf16[8,2], index: 4, kind: input, shape index: {}]
  %s5 = inlined_call_operand.vmem [shape: bf16[8,8], index: 5, kind: input, shape index: {}]
  %s6 = inlined_call_operand.vmem [shape: bf16[8,8], index: 6, kind: input, shape index: {}]
  %s7 = inlined_call_operand.vmem [shape: f32[1,8], index: 7, kind: input, shape index: {}]
  %s8 = inlined_call_operand.vmem [shape: f32[2,256,8], index: 8, kind: output, shape index: {}]
  %s9 = sld [smem:[#allocation0]]
  $region111: #{tpu_custom_call.1} parent=0
    _
  %s11 = ssub.s32 1, %s9
  %s12 = scalar_select 0, %s11, %s9
  $region1: #{tpu_custom_call.1} parent=0
    #allocation6 [shape = 'u8[131072]{0}', space=vmem, size = 0x20000, scoped, tag = 'input window, operand 2']
    loop: start=0, step=1, limit=10
    $region2: #{tpu_custom_call.1} parent=1 // loop_pre_header
      _
    $region3: #{tpu_custom_call.1} parent=1 // loop_header
      %s14 = sphi 0, %s18
      %p15 = scmp.ge.s32.totalorder %s14, 10
      %s21 = sphi 0, %s40
      %s22 = sphi 0, %s36
      %s23 = sphi 0, %s32
      %s24 = sphi 0, %s21
      %s25 = sphi 0, %s22
      %s26 = sphi 0, %s23
      %s27 = sphi 0, %s24
      %s28 = sphi 0, %s25
      %s29 = sphi 0, %s26
      %s45 = sphi 0, %s47
      %s48 = sphi 0, %s45
      %s49 = sphi 0, %s48
      %s65 = sphi 0, %s49
      %s73 = sphi 0, %s75
      %s76 = sphi 0, %s73
      %s77 = sphi 0, %s76
      %s93 = sphi 0, %s77
      %s101 = sphi 0, %s103
      %s104 = sphi 0, %s101
      %s105 = sphi 0, %s104
      %s121 = sphi 0, %s105
      %s125 = sphi 0, %s125
      %s127 = sphi 0, %s125
      %s128 = sphi 0, %s127
      %s142 = sphi 0, %s128
      %s146 = sphi 0, %s146
      %s148 = sphi 0, %s146
      %s149 = sphi 0, %s148
      %s163 = sphi 0, %s149
      %s167 = sphi 0, %s167
      %s169 = sphi 0, %s167
      %s170 = sphi 0, %s169
      %s184 = sphi 0, %s170
      %s188 = sphi 0, %s188
      %s190 = sphi 0, %s188
      %s191 = sphi 0, %s190
      %s205 = sphi 0, %s191
      %s209 = sphi 0, %s209
      %s211 = sphi 0, %s209
      %s212 = sphi 0, %s211
      %s226 = sphi 0, %s212
      %s234 = sphi 0, %s236
      %s237 = sphi 0, %s234
      %s238 = sphi 0, %s237
      %s254 = sphi 0, %s238
    $region4: #{tpu_custom_call.1} parent=1 // loop_header_branch
      %17 = sbr.rel (%p15) target = $region8
    $region5: #{tpu_custom_call.1} parent=1 // loop_body
      %s19 = ssub.s32 %s14, 1
      %s20 = ssub.s32 %s14, 2
      %s30 = sadd.s32 1, %s23
      %p31 = scmp.ge.s32.totalorder %s30, 2
      %s32 = scalar_select %p31, 0, %s30
      %s33 = sadd.s32 1, %s22
      %s34 = scalar_select %p31, %s33, %s22
      %p35 = scmp.ge.s32.totalorder %s34, 2
      %s36 = scalar_select %p35, 0, %s34
      %s37 = sadd.s32 1, %s21
      %s38 = scalar_select %p35, %s37, %s21
      %p39 = scmp.ge.s32.totalorder %s38, 2
      %s40 = scalar_select %p39, 0, %s38
      %s41 = ssub.s32 %s21, %s40
      %s42 = ssub.s32 %s22, %s36
      %s43 = sor.u32 %s41, %s42
      %p44 = scmp.eq.s32.totalorder %s43, 0
      %s46 = sadd.s32 %s45, 1
      %s47 = scalar_select %p44, %s45, %s46
      %p50 = pneg %p44
      %p51 = scmp.eq.s32.totalorder %s14, 7
      %p52 = por %p50, %p51
      %p53 = scmp.ne.s32.totalorder %s45, %s48
      %p54 = scmp.eq.s32.totalorder %s14, 0
      %p55 = por %p53, %p54
      %p56 = scmp.ne.s32.totalorder %s45, %s48
      %p57 = scmp.eq.s32.totalorder %s19, 7
      %p58 = por %p56, %p57
      %p59 = scmp.ne.s32.totalorder %s48, %s49
      %p60 = scmp.eq.s32.totalorder %s19, 0
      %p61 = por %p59, %p60
      %p62 = scmp.ne.s32.totalorder %s48, %s49
      %p63 = scmp.eq.s32.totalorder %s20, 7
      %p64 = por %p62, %p63
      %p66 = scmp.ne.s32.totalorder %s49, %s65
      %p67 = scmp.eq.s32.totalorder %s20, 0
      %p68 = por %p66, %p67
      %s69 = ssub.s32 %s21, %s40
      %s70 = ssub.s32 %s23, %s32
      %s71 = sor.u32 %s69, %s70
      %p72 = scmp.eq.s32.totalorder %s71, 0
      %s74 = sadd.s32 %s73, 1
      %s75 = scalar_select %p72, %s73, %s74
      %p78 = pneg %p72
      %p79 = scmp.eq.s32.totalorder %s14, 7
      %p80 = por %p78, %p79
      %p81 = scmp.ne.s32.totalorder %s73, %s76
      %p82 = scmp.eq.s32.totalorder %s14, 0
      %p83 = por %p81, %p82
      %p84 = scmp.ne.s32.totalorder %s73, %s76
      %p85 = scmp.eq.s32.totalorder %s19, 7
      %p86 = por %p84, %p85
      %p87 = scmp.ne.s32.totalorder %s76, %s77
      %p88 = scmp.eq.s32.totalorder %s19, 0
      %p89 = por %p87, %p88
      %p90 = scmp.ne.s32.totalorder %s76, %s77
      %p91 = scmp.eq.s32.totalorder %s20, 7
      %p92 = por %p90, %p91
      %p94 = scmp.ne.s32.totalorder %s77, %s93
      %p95 = scmp.eq.s32.totalorder %s20, 0
      %p96 = por %p94, %p95
      %s97 = ssub.s32 %s22, %s36
      %s98 = ssub.s32 %s23, %s32
      %s99 = sor.u32 %s97, %s98
      %p100 = scmp.eq.s32.totalorder %s99, 0
      %s102 = sadd.s32 %s101, 1
      %s103 = scalar_select %p100, %s101, %s102
      %p106 = pneg %p100
      %p107 = scmp.eq.s32.totalorder %s14, 7
      %p108 = por %p106, %p107
      %p109 = scmp.ne.s32.totalorder %s101, %s104
      %p110 = scmp.eq.s32.totalorder %s14, 0
      %p111 = por %p109, %p110
      %p112 = scmp.ne.s32.totalorder %s101, %s104
      %p113 = scmp.eq.s32.totalorder %s19, 7
      %p114 = por %p112, %p113
      %p115 = scmp.ne.s32.totalorder %s104, %s105
      %p116 = scmp.eq.s32.totalorder %s19, 0
      %p117 = por %p115, %p116
      %p118 = scmp.ne.s32.totalorder %s104, %s105
      %p119 = scmp.eq.s32.totalorder %s20, 7
      %p120 = por %p118, %p119
      %p122 = scmp.ne.s32.totalorder %s105, %s121
      %p123 = scmp.eq.s32.totalorder %s20, 0
      %p124 = por %p122, %p123
      %s126 = sadd.s32 %s125, 1
      %p129 = scmp.eq.s32.totalorder %s14, 7
      %p130 = scmp.ne.s32.totalorder %s125, %s127
      %p131 = scmp.eq.s32.totalorder %s14, 0
      %p132 = por %p130, %p131
      %p133 = scmp.ne.s32.totalorder %s125, %s127
      %p134 = scmp.eq.s32.totalorder %s19, 7
      %p135 = por %p133, %p134
      %p136 = scmp.ne.s32.totalorder %s127, %s128
      %p137 = scmp.eq.s32.totalorder %s19, 0
      %p138 = por %p136, %p137
      %p139 = scmp.ne.s32.totalorder %s127, %s128
      %p140 = scmp.eq.s32.totalorder %s20, 7
      %p141 = por %p139, %p140
      %p143 = scmp.ne.s32.totalorder %s128, %s142
      %p144 = scmp.eq.s32.totalorder %s20, 0
      %p145 = por %p143, %p144
      %s147 = sadd.s32 %s146, 1
      %p150 = scmp.eq.s32.totalorder %s14, 7
      %p151 = scmp.ne.s32.totalorder %s146, %s148
      %p152 = scmp.eq.s32.totalorder %s14, 0
      %p153 = por %p151, %p152
      %p154 = scmp.ne.s32.totalorder %s146, %s148
      %p155 = scmp.eq.s32.totalorder %s19, 7
      %p156 = por %p154, %p155
      %p157 = scmp.ne.s32.totalorder %s148, %s149
      %p158 = scmp.eq.s32.totalorder %s19, 0
      %p159 = por %p157, %p158
      %p160 = scmp.ne.s32.totalorder %s148, %s149
      %p161 = scmp.eq.s32.totalorder %s20, 7
      %p162 = por %p160, %p161
      %p164 = scmp.ne.s32.totalorder %s149, %s163
      %p165 = scmp.eq.s32.totalorder %s20, 0
      %p166 = por %p164, %p165
      %s168 = sadd.s32 %s167, 1
      %p171 = scmp.eq.s32.totalorder %s14, 7
      %p172 = scmp.ne.s32.totalorder %s167, %s169
      %p173 = scmp.eq.s32.totalorder %s14, 0
      %p174 = por %p172, %p173
      %p175 = scmp.ne.s32.totalorder %s167, %s169
      %p176 = scmp.eq.s32.totalorder %s19, 7
      %p177 = por %p175, %p176
      %p178 = scmp.ne.s32.totalorder %s169, %s170
      %p179 = scmp.eq.s32.totalorder %s19, 0
      %p180 = por %p178, %p179
      %p181 = scmp.ne.s32.totalorder %s169, %s170
      %p182 = scmp.eq.s32.totalorder %s20, 7
      %p183 = por %p181, %p182
      %p185 = scmp.ne.s32.totalorder %s170, %s184
      %p186 = scmp.eq.s32.totalorder %s20, 0
      %p187 = por %p185, %p186
      %s189 = sadd.s32 %s188, 1
      %p192 = scmp.eq.s32.totalorder %s14, 7
      %p193 = scmp.ne.s32.totalorder %s188, %s190
      %p194 = scmp.eq.s32.totalorder %s14, 0
      %p195 = por %p193, %p194
      %p196 = scmp.ne.s32.totalorder %s188, %s190
      %p197 = scmp.eq.s32.totalorder %s19, 7
      %p198 = por %p196, %p197
      %p199 = scmp.ne.s32.totalorder %s190, %s191
      %p200 = scmp.eq.s32.totalorder %s19, 0
      %p201 = por %p199, %p200
      %p202 = scmp.ne.s32.totalorder %s190, %s191
      %p203 = scmp.eq.s32.totalorder %s20, 7
      %p204 = por %p202, %p203
      %p206 = scmp.ne.s32.totalorder %s191, %s205
      %p207 = scmp.eq.s32.totalorder %s20, 0
      %p208 = por %p206, %p207
      %s210 = sadd.s32 %s209, 1
      %p213 = scmp.eq.s32.totalorder %s14, 7
      %p214 = scmp.ne.s32.totalorder %s209, %s211
      %p215 = scmp.eq.s32.totalorder %s14, 0
      %p216 = por %p214, %p215
      %p217 = scmp.ne.s32.totalorder %s209, %s211
      %p218 = scmp.eq.s32.totalorder %s19, 7
      %p219 = por %p217, %p218
      %p220 = scmp.ne.s32.totalorder %s211, %s212
      %p221 = scmp.eq.s32.totalorder %s19, 0
      %p222 = por %p220, %p221
      %p223 = scmp.ne.s32.totalorder %s211, %s212
      %p224 = scmp.eq.s32.totalorder %s20, 7
      %p225 = por %p223, %p224
      %p227 = scmp.ne.s32.totalorder %s212, %s226
      %p228 = scmp.eq.s32.totalorder %s20, 0
      %p229 = por %p227, %p228
      %s230 = ssub.s32 %s21, %s40
      %s231 = ssub.s32 %s22, %s36
      %s232 = sor.u32 %s230, %s231
      %p233 = scmp.eq.s32.totalorder %s232, 0
      %s235 = sadd.s32 %s234, 1
      %s236 = scalar_select %p233, %s234, %s235
      %p239 = pneg %p233
      %p240 = scmp.eq.s32.totalorder %s14, 7
      %p241 = por %p239, %p240
      %p242 = scmp.ne.s32.totalorder %s234, %s237
      %p243 = scmp.eq.s32.totalorder %s14, 0
      %p244 = por %p242, %p243
      %p245 = scmp.ne.s32.totalorder %s234, %s237
      %p246 = scmp.eq.s32.totalorder %s19, 7
      %p247 = por %p245, %p246
      %p248 = scmp.ne.s32.totalorder %s237, %s238
      %p249 = scmp.eq.s32.totalorder %s19, 0
      %p250 = por %p248, %p249
      %p251 = scmp.ne.s32.totalorder %s237, %s238
      %p252 = scmp.eq.s32.totalorder %s20, 7
      %p253 = por %p251, %p252
      %p255 = scmp.ne.s32.totalorder %s238, %s254
      %p256 = scmp.eq.s32.totalorder %s20, 0
      %p257 = por %p255, %p256
      %p258 = scmp.le.s32.totalorder 1, %s14
      %p259 = scmp.lt.s32.totalorder %s14, 9
      %p260 = pnand %p258, %p259
      %p261 = pneg %p260
      // Predicated region
      $region9: #{tpu_custom_call.1} parent=5 // pred_check
        _
      $region10: #{tpu_custom_call.1} parent=5 // pred_check_branch
        %263 = sbr.rel (%p260) target = $region12
      $region11: #{tpu_custom_call.1} parent=5 // pred_region
        %s264 = ssub.s32 %s14, 1
        // Predicated region
        $region13: #{tpu_custom_call.1} parent=11 // pred_check
          %p265 = pneg %p138
        $region14: #{tpu_custom_call.1} parent=11 // pred_check_branch
          %267 = sbr.rel (%p265) target = $region16
        $region15: #{tpu_custom_call.1} parent=11 // pred_region
          _
        $region16: #{tpu_custom_call.1} parent=11 // pred_fallthru
          _
        // Predicated region
        $region17: #{tpu_custom_call.1} parent=11 // pred_check
          %p268 = pneg %p159
        $region18: #{tpu_custom_call.1} parent=11 // pred_check_branch
          %270 = sbr.rel (%p268) target = $region20
        $region19: #{tpu_custom_call.1} parent=11 // pred_region
          _
        $region20: #{tpu_custom_call.1} parent=11 // pred_fallthru
          _
        // Predicated region
        $region21: #{tpu_custom_call.1} parent=11 // pred_check
          %p271 = pneg %p180
        $region22: #{tpu_custom_call.1} parent=11 // pred_check_branch
          %273 = sbr.rel (%p271) target = $region24
        $region23: #{tpu_custom_call.1} parent=11 // pred_region
          _
        $region24: #{tpu_custom_call.1} parent=11 // pred_fallthru
          _
        // Predicated region
        $region25: #{tpu_custom_call.1} parent=11 // pred_check
          %p274 = pneg %p201
        $region26: #{tpu_custom_call.1} parent=11 // pred_check_branch
          %276 = sbr.rel (%p274) target = $region28
        $region27: #{tpu_custom_call.1} parent=11 // pred_region
          _
        $region28: #{tpu_custom_call.1} parent=11 // pred_fallthru
          _
        // Predicated region
        $region29: #{tpu_custom_call.1} parent=11 // pred_check
          %p277 = pneg %p222
        $region30: #{tpu_custom_call.1} parent=11 // pred_check_branch
          %279 = sbr.rel (%p277) target = $region32
        $region31: #{tpu_custom_call.1} parent=11 // pred_region
          _
        $region32: #{tpu_custom_call.1} parent=11 // pred_fallthru
          _
      $region12: #{tpu_custom_call.1} parent=5 // pred_fallthru
        _
      %p280 = scmp.lt.s32.totalorder %s14, 8
      // Predicated region
      $region33: #{tpu_custom_call.1} parent=5 // pred_check
        %p281 = pneg %p280
      $region34: #{tpu_custom_call.1} parent=5 // pred_check_branch
        %283 = sbr.rel (%p281) target = $region36
      $region35: #{tpu_custom_call.1} parent=5 // pred_region
        // Predicated region
        $region37: #{tpu_custom_call.1} parent=35 // pred_check
          %p284 = pneg %p55
        $region38: #{tpu_custom_call.1} parent=35 // pred_check_branch
          %286 = sbr.rel (%p284) target = $region40
        $region39: #{tpu_custom_call.1} parent=35 // pred_region
          %s287 = smul.u32 16, %s22
          %p288 = scmp.lt.s32.totalorder %s21, 1
          %s289 = scalar_select %p288, %s21, 1
          %p290 = scmp.lt.s32.totalorder %s287, 31
          %s291 = scalar_select %p290, %s287, 31
          %s292 = smul.addr %s289, 32
          %s293 = sadd.s32 %s291, %s292
          %s294 = smul.addr %s293, 8
          %s295 = scalar_lea.vmem %s0, %s294
          %s296 = smul.u32 16, %s22
        $region40: #{tpu_custom_call.1} parent=35 // pred_fallthru
          _
        // Predicated region
        $region41: #{tpu_custom_call.1} parent=35 // pred_check
          %p297 = pneg %p83
        $region42: #{tpu_custom_call.1} parent=35 // pred_check_branch
          %299 = sbr.rel (%p297) target = $region44
        $region43: #{tpu_custom_call.1} parent=35 // pred_region
          %s300 = smul.u32 16, %s23
          %p301 = scmp.lt.s32.totalorder %s21, 1
          %s302 = scalar_select %p301, %s21, 1
          %p303 = scmp.lt.s32.totalorder %s300, 31
          %s304 = scalar_select %p303, %s300, 31
          %s305 = smul.addr %s302, 32
          %s306 = sadd.s32 %s304, %s305
          %s307 = smul.addr %s306, 8
          %s308 = scalar_lea.vmem %s1, %s307
          %s309 = smul.u32 16, %s23
        $region44: #{tpu_custom_call.1} parent=35 // pred_fallthru
          _
        // Predicated region
        $region45: #{tpu_custom_call.1} parent=35 // pred_check
          %p310 = pneg %p111
        $region46: #{tpu_custom_call.1} parent=35 // pred_check_branch
          %312 = sbr.rel (%p310) target = $region48
        $region47: #{tpu_custom_call.1} parent=35 // pred_region
          %s313 = sand.u32 %s101, 1
          %s314 = sand.u32 %s101, 1
          %s315 = smul.addr %s314, 128
          %s316 = scalar_lea.vmem [#allocation6], %s315
          %s317 = smul.u32 16, %s22
          %s318 = smul.addr %s317, 2
          %s319 = sadd.s32 %s23, %s318
          %s320 = smul.addr %s319, 8
          %s321 = scalar_lea.vmem %s2, %s320
          // Predicated region
          $region49: #{tpu_custom_call.1} parent=47 // pred_check
            _
          $region50: #{tpu_custom_call.1} parent=47 // pred_check_branch
            %323 = sbr.rel (0) target = $region52
          $region51: #{tpu_custom_call.1} parent=47 // pred_region
            // Predicated region
            $region53: #{tpu_custom_call.1} parent=51 // pred_check
              _
            $region54: #{tpu_custom_call.1} parent=51 // pred_check_branch
              %325 = sbr.rel (0) target = $region56
            $region55: #{tpu_custom_call.1} parent=51 // pred_region
              // Predicated region
              $region68: #{tpu_custom_call.1} parent=55 // pred_check
                _
              $region69: #{tpu_custom_call.1} parent=55 // pred_check_branch
                %370 = sbr.rel (0) target = $region71
              $region70: #{tpu_custom_call.1} parent=55 // pred_region
                loop: start=0, step=1, limit=1
                $region72: #{tpu_custom_call.1} parent=70 // loop_pre_header
                  _
                $region73: #{tpu_custom_call.1} parent=70 // loop_header
                  %s372 = sphi 0, %s376
                  %p373 = scmp.ge.s32.totalorder %s372, 1
                  %s377 = sphi %s321, %s321
                  %s378 = sphi %s316, %s316
                $region74: #{tpu_custom_call.1} parent=70 // loop_header_branch
                  %375 = sbr.rel (%p373) target = $region78
                $region75: #{tpu_custom_call.1} parent=70 // loop_body
                  %v379 = vld [vmem:[%s377] sm:$0xff]
                  %380 = vst [vmem:[%s378] sm:$0xff] %v379
                  %v381 = vld [vmem:[%s377 + $0x10] sm:$0xff]
                  %382 = vst [vmem:[%s378 + $0x8] sm:$0xff] %v381
                  %v383 = vld [vmem:[%s377 + $0x20] sm:$0xff]
                  %384 = vst [vmem:[%s378 + $0x10] sm:$0xff] %v383
                  %v385 = vld [vmem:[%s377 + $0x30] sm:$0xff]
                  %386 = vst [vmem:[%s378 + $0x18] sm:$0xff] %v385
                  %v387 = vld [vmem:[%s377 + $0x40] sm:$0xff]
                  %388 = vst [vmem:[%s378 + $0x20] sm:$0xff] %v387
                  %v389 = vld [vmem:[%s377 + $0x50] sm:$0xff]
                  %390 = vst [vmem:[%s378 + $0x28] sm:$0xff] %v389
                  %v391 = vld [vmem:[%s377 + $0x60] sm:$0xff]
                  %392 = vst [vmem:[%s378 + $0x30] sm:$0xff] %v391
                  %v393 = vld [vmem:[%s377 + $0x70] sm:$0xff]
                  %394 = vst [vmem:[%s378 + $0x38] sm:$0xff] %v393
                  %v395 = vld [vmem:[%s377 + $0x80] sm:$0xff]
                  %396 = vst [vmem:[%s378 + $0x40] sm:$0xff] %v395
                  %v397 = vld [vmem:[%s377 + $0x90] sm:$0xff]
                  %398 = vst [vmem:[%s378 + $0x48] sm:$0xff] %v397
                  %v399 = vld [vmem:[%s377 + $0xa0] sm:$0xff]
                  %400 = vst [vmem:[%s378 + $0x50] sm:$0xff] %v399
                  %v401 = vld [vmem:[%s377 + $0xb0] sm:$0xff]
                  %402 = vst [vmem:[%s378 + $0x58] sm:$0xff] %v401
                  %v403 = vld [vmem:[%s377 + $0xc0] sm:$0xff]
                  %404 = vst [vmem:[%s378 + $0x60] sm:$0xff] %v403
                  %v405 = vld [vmem:[%s377 + $0xd0] sm:$0xff]
                  %406 = vst [vmem:[%s378 + $0x68] sm:$0xff] %v405
                  %v407 = vld [vmem:[%s377 + $0xe0] sm:$0xff]
                  %408 = vst [vmem:[%s378 + $0x70] sm:$0xff] %v407
                  %v409 = vld [vmem:[%s377 + $0xf0] sm:$0xff]
                  %410 = vst [vmem:[%s378 + $0x78] sm:$0xff] %v409
                $region76: #{tpu_custom_call.1} parent=70 // loop_footer
                  %s376 = sadd.s32 1, %s372
                $region77: #{tpu_custom_call.1} parent=70 // loop_footer_branch
                  %371 = sbr.rel target = $region73
                $region78: #{tpu_custom_call.1} parent=70 // loop_exit
                  _
              $region71: #{tpu_custom_call.1} parent=55 // pred_fallthru
                _
              // Predicated region
              $region79: #{tpu_custom_call.1} parent=55 // pred_check
                _
              $region80: #{tpu_custom_call.1} parent=55 // pred_check_branch
                %412 = sbr.rel target = $region82
              $region81: #{tpu_custom_call.1} parent=55 // pred_region
                _
              $region82: #{tpu_custom_call.1} parent=55 // pred_fallthru
                _
            $region56: #{tpu_custom_call.1} parent=51 // pred_fallthru
              _
            // Predicated region
            $region57: #{tpu_custom_call.1} parent=51 // pred_check
              _
            $region58: #{tpu_custom_call.1} parent=51 // pred_check_branch
              %327 = sbr.rel target = $region60
            $region59: #{tpu_custom_call.1} parent=51 // pred_region
              loop: start=0, step=1, limit=1
              $region61: #{tpu_custom_call.1} parent=59 // loop_pre_header
                _
              $region62: #{tpu_custom_call.1} parent=59 // loop_header
                %s330 = sphi 0, %s334
                %p331 = scmp.ge.s32.totalorder %s330, 1
                %s335 = sphi %s321, %s321
                %s336 = sphi %s316, %s316
              $region63: #{tpu_custom_call.1} parent=59 // loop_header_branch
                %333 = sbr.rel (%p331) target = $region67
              $region64: #{tpu_custom_call.1} parent=59 // loop_body
                %v337 = vld [vmem:[%s335] sm:$0xff]
                %338 = vst [vmem:[%s336] sm:$0xff] %v337
                %v339 = vld [vmem:[%s335 + $0x10] sm:$0xff]
                %340 = vst [vmem:[%s336 + $0x8] sm:$0xff] %v339
                %v341 = vld [vmem:[%s335 + $0x20] sm:$0xff]
                %342 = vst [vmem:[%s336 + $0x10] sm:$0xff] %v341
                %v343 = vld [vmem:[%s335 + $0x30] sm:$0xff]
                %344 = vst [vmem:[%s336 + $0x18] sm:$0xff] %v343
                %v345 = vld [vmem:[%s335 + $0x40] sm:$0xff]
                %346 = vst [vmem:[%s336 + $0x20] sm:$0xff] %v345
                %v347 = vld [vmem:[%s335 + $0x50] sm:$0xff]
                %348 = vst [vmem:[%s336 + $0x28] sm:$0xff] %v347
                %v349 = vld [vmem:[%s335 + $0x60] sm:$0xff]
                %350 = vst [vmem:[%s336 + $0x30] sm:$0xff] %v349
                %v351 = vld [vmem:[%s335 + $0x70] sm:$0xff]
                %352 = vst [vmem:[%s336 + $0x38] sm:$0xff] %v351
                %v353 = vld [vmem:[%s335 + $0x80] sm:$0xff]
                %354 = vst [vmem:[%s336 + $0x40] sm:$0xff] %v353
                %v355 = vld [vmem:[%s335 + $0x90] sm:$0xff]
                %356 = vst [vmem:[%s336 + $0x48] sm:$0xff] %v355
                %v357 = vld [vmem:[%s335 + $0xa0] sm:$0xff]
                %358 = vst [vmem:[%s336 + $0x50] sm:$0xff] %v357
                %v359 = vld [vmem:[%s335 + $0xb0] sm:$0xff]
                %360 = vst [vmem:[%s336 + $0x58] sm:$0xff] %v359
                %v361 = vld [vmem:[%s335 + $0xc0] sm:$0xff]
                %362 = vst [vmem:[%s336 + $0x60] sm:$0xff] %v361
                %v363 = vld [vmem:[%s335 + $0xd0] sm:$0xff]
                %364 = vst [vmem:[%s336 + $0x68] sm:$0xff] %v363
                %v365 = vld [vmem:[%s335 + $0xe0] sm:$0xff]
                %366 = vst [vmem:[%s336 + $0x70] sm:$0xff] %v365
                %v367 = vld [vmem:[%s335 + $0xf0] sm:$0xff]
                %368 = vst [vmem:[%s336 + $0x78] sm:$0xff] %v367
              $region65: #{tpu_custom_call.1} parent=59 // loop_footer
                %s334 = sadd.s32 1, %s330
              $region66: #{tpu_custom_call.1} parent=59 // loop_footer_branch
                %329 = sbr.rel target = $region62
              $region67: #{tpu_custom_call.1} parent=59 // loop_exit
                _
            $region60: #{tpu_custom_call.1} parent=51 // pred_fallthru
              _
          $region52: #{tpu_custom_call.1} parent=47 // pred_fallthru
            _
          %413 = vnop
        $region48: #{tpu_custom_call.1} parent=35 // pred_fallthru
          _
      $region36: #{tpu_custom_call.1} parent=5 // pred_fallthru
        _
      %p414 = scmp.le.s32.totalorder 1, %s14
      %p415 = scmp.lt.s32.totalorder %s14, 9
      %p416 = pnand %p414, %p415
      %p417 = pneg %p416
      // Predicated region
      $region83: #{tpu_custom_call.1} parent=5 // pred_check
        _
      $region84: #{tpu_custom_call.1} parent=5 // pred_check_branch
        %419 = sbr.rel (%p416) target = $region86
      $region85: #{tpu_custom_call.1} parent=5 // pred_region
        %s420 = ssub.s32 %s14, 1
        %s421 = sand.u32 %s104, 1
        %s422 = sand.u32 %s104, 1
        %s423 = smul.addr %s422, 128
        %s424 = scalar_lea.vmem [#allocation6], %s423
        // Predicated region
        $region87: #{tpu_custom_call.1} parent=85 // pred_check
          %p425 = pneg %p117
        $region88: #{tpu_custom_call.1} parent=85 // pred_check_branch
          %427 = sbr.rel (%p425) target = $region90
        $region89: #{tpu_custom_call.1} parent=85 // pred_region
          _
        $region90: #{tpu_custom_call.1} parent=85 // pred_fallthru
          _
        %s428 = smul.u32 16, %s25
        %p429 = scmp.lt.s32.totalorder %s24, 1
        %s430 = scalar_select %p429, %s24, 1
        %p431 = scmp.lt.s32.totalorder %s428, 31
        %s432 = scalar_select %p431, %s428, 31
        %s433 = smul.addr %s430, 32
        %s434 = sadd.s32 %s432, %s433
        %s435 = smul.addr %s434, 8
        %s436 = scalar_lea.vmem %s0, %s435
        %p437 = pneg %p61
        %p438 = pneg %p58
        %s439 = smul.u32 16, %s26
        %p440 = scmp.lt.s32.totalorder %s24, 1
        %s441 = scalar_select %p440, %s24, 1
        %p442 = scmp.lt.s32.totalorder %s439, 31
        %s443 = scalar_select %p442, %s439, 31
        %s444 = smul.addr %s441, 32
        %s445 = sadd.s32 %s443, %s444
        %s446 = smul.addr %s445, 8
        %s447 = scalar_lea.vmem %s1, %s446
        %p448 = pneg %p89
        %p449 = pneg %p86
        %s450 = sand.u32 %s104, 1
        %s451 = sand.u32 %s104, 1
        %s452 = smul.addr %s451, 128
        %s453 = scalar_lea.vmem [#allocation6], %s452
        %p454 = pneg %p117
        %p455 = pneg %p114
        %p456 = pneg %p138
        %p457 = pneg %p135
        %p458 = pneg %p159
        %p459 = pneg %p156
        %p460 = pneg %p180
        %p461 = pneg %p177
        %p462 = pneg %p201
        %p463 = pneg %p198
        %p464 = pneg %p222
        %p465 = pneg %p219
        %p466 = pneg %p250
        %p467 = pneg %p247
        %s468 = smul.u32 16, %s25
        %p469 = scmp.lt.s32.totalorder %s24, 1
        %s470 = scalar_select %p469, %s24, 1
        %p471 = scmp.lt.s32.totalorder %s468, 31
        %s472 = scalar_select %p471, %s468, 31
        %s473 = smul.addr %s470, 32
        %s474 = sadd.s32 %s472, %s473
        %s475 = smul.addr %s474, 8
        %s476 = scalar_lea.vmem %s8, %s475
        %s477 = smul.u32 16, %s25
        %p478 = scmp.lt.s32.totalorder %s24, 1
        %s479 = scalar_select %p478, %s24, 1
        %p480 = scmp.lt.s32.totalorder %s477, 31
        %s481 = scalar_select %p480, %s477, 31
        %s482 = smul.addr %s479, 32
        %s483 = sadd.s32 %s481, %s482
        %s484 = smul.addr %s483, 8
        %s485 = scalar_lea.vmem %s0, %s484
        %s486 = smul.u32 16, %s25
        %s487 = smul.u32 16, %s26
        %p488 = scmp.lt.s32.totalorder %s24, 1
        %s489 = scalar_select %p488, %s24, 1
        %p490 = scmp.lt.s32.totalorder %s487, 31
        %s491 = scalar_select %p490, %s487, 31
        %s492 = smul.addr %s489, 32
        %s493 = sadd.s32 %s491, %s492
        %s494 = smul.addr %s493, 8
        %s495 = scalar_lea.vmem %s1, %s494
        %s496 = smul.u32 16, %s26
        %s497 = smul.u32 16, %s25
        %s498 = smul.u32 16, %s25
        %p499 = scmp.lt.s32.totalorder %s24, 1
        %s500 = scalar_select %p499, %s24, 1
        %p501 = scmp.lt.s32.totalorder %s498, 31
        %s502 = scalar_select %p501, %s498, 31
        %s503 = smul.addr %s500, 32
        %s504 = sadd.s32 %s502, %s503
        %s505 = smul.addr %s504, 8
        %s506 = scalar_lea.vmem %s8, %s505
        %s507 = smul.u32 16, %s25
        %p509 = scmp.eq.s32.totalorder %s26, 0
        // Predicated region
        $region91: #{tpu_custom_call.1} parent=85 // pred_check
          %p510 = pneg %p509
        $region92: #{tpu_custom_call.1} parent=85 // pred_check_branch
          %512 = sbr.rel (%p510) target = $region94
        $region93: #{tpu_custom_call.1} parent=85 // pred_region
          %v513 = vld [vmem:[%s485] sm:$0xff]
          %v514 = vld [vmem:[%s485 + $0x8] sm:$0xff]
          %v515 = vld [vmem:[%s485 + $0x10] sm:$0xff]
          %v516 = vld [vmem:[%s485 + $0x18] sm:$0xff]
          %v517 = vld [vmem:[%s485 + $0x20] sm:$0xff]
          %v518 = vld [vmem:[%s485 + $0x28] sm:$0xff]
          %v519 = vld [vmem:[%s485 + $0x30] sm:$0xff]
          %v520 = vld [vmem:[%s485 + $0x38] sm:$0xff]
          %v521 = vld [vmem:[%s485 + $0x40] sm:$0xff]
          %v522 = vld [vmem:[%s485 + $0x48] sm:$0xff]
          %v523 = vld [vmem:[%s485 + $0x50] sm:$0xff]
          %v524 = vld [vmem:[%s485 + $0x58] sm:$0xff]
          %v525 = vld [vmem:[%s485 + $0x60] sm:$0xff]
          %v526 = vld [vmem:[%s485 + $0x68] sm:$0xff]
          %v527 = vld [vmem:[%s485 + $0x70] sm:$0xff]
          %v528 = vld [vmem:[%s485 + $0x78] sm:$0xff]
          %v529 = vpack.c.bf16 %v514, %v513
          %v530 = vpack.c.bf16 %v516, %v515
          %v531 = vpack.c.bf16 %v518, %v517
          %v532 = vpack.c.bf16 %v520, %v519
          %v533 = vpack.c.bf16 %v522, %v521
          %v534 = vpack.c.bf16 %v524, %v523
          %v535 = vpack.c.bf16 %v526, %v525
          %v536 = vpack.c.bf16 %v528, %v527
          %v537 = vld [vmem:[%s3] sm:$0xf]
          %vm538 = vcmask 64512
          %v540 = vsel %vm538, %v529, 0
          %v543 = vsel %vm538, %v530, 0
          %v546 = vsel %vm538, %v531, 0
          %v549 = vsel %vm538, %v532, 0
          %v552 = vsel %vm538, %v533, 0
          %v555 = vsel %vm538, %v534, 0
          %v558 = vsel %vm538, %v535, 0
          %v561 = vsel %vm538, %v536, 0
          %vm563 = vcmask 1043456
          %v565 = vsel %vm563, %v537, 0
          %567 = vmatprep.subr.bf16.mxu0 0
          %568 = vmatpush1.bf16.msra.mxu0 %v565
          %569 = vmatprep.subr.bf16.mxu0 0
          %570 = vmatpush1.bf16.msra.mxu0 0
          %571 = vmatprep.subr.bf16.mxu0 0
          %572 = vmatpush1.bf16.msra.mxu0 0
          %573 = vmatprep.subr.bf16.mxu0 0
          %574 = vmatpush1.bf16.msra.mxu0 0
          %575 = vmatprep.subr.bf16.mxu0 0
          %576 = vmatpush1.bf16.msra.mxu0 0
          %577 = vmatprep.subr.bf16.mxu0 0
          %578 = vmatpush1.bf16.msra.mxu0 0
          %579 = vmatprep.subr.bf16.mxu0 0
          %580 = vmatpush1.bf16.msra.mxu0 0
          %581 = vmatprep.subr.bf16.mxu0 0
          %582 = vmatpush1.bf16.msra.mxu0 0
          %583 = vmatprep.subr.bf16.mxu0 0
          %584 = vmatpush1.bf16.msra.mxu0 0
          %585 = vmatprep.subr.bf16.mxu0 0
          %586 = vmatpush1.bf16.msra.mxu0 0
          %587 = vmatprep.subr.bf16.mxu0 0
          %588 = vmatpush1.bf16.msra.mxu0 0
          %589 = vmatprep.subr.bf16.mxu0 0
          %590 = vmatpush1.bf16.msra.mxu0 0
          %591 = vmatprep.subr.bf16.mxu0 0
          %592 = vmatpush1.bf16.msra.mxu0 0
          %593 = vmatprep.subr.bf16.mxu0 0
          %594 = vmatpush1.bf16.msra.mxu0 0
          %595 = vmatprep.subr.bf16.mxu0 0
          %596 = vmatpush1.bf16.msra.mxu0 0
          %597 = vmatprep.subr.bf16.mxu0 0
          %598 = vmatpush1.bf16.msra.mxu0 0
          %599 = vmatprep.mubr.bf16.mxu0 0
          %600 = vmatmul.mubr.bf16.gmra.mrb[0].mxu0 %v540
          %v601 = vpop.f32.mrb[0].mxu0
          %v602 = vadd.f32 0.0, %v601
          %v603 = vpop.f32.mrb[0].mxu0
          %v604 = vpop.f32.mrb[0].mxu0
          %v605 = vadd.f32 0.0, %v604
          %v606 = vpop.f32.mrb[0].mxu0
          %607 = vmatprep.mubr.bf16.mxu0 0
          %608 = vmatmul.mubr.bf16.gmra.mrb[0].mxu0 %v543
          %v609 = vpop.f32.mrb[0].mxu0
          %v610 = vadd.f32 0.0, %v609
          %v611 = vpop.f32.mrb[0].mxu0
          %v612 = vpop.f32.mrb[0].mxu0
          %v613 = vadd.f32 0.0, %v612
          %v614 = vpop.f32.mrb[0].mxu0
          %615 = vmatprep.mubr.bf16.mxu0 0
          %616 = vmatmul.mubr.bf16.gmra.mrb[0].mxu0 %v546
          %v617 = vpop.f32.mrb[0].mxu0
          %v618 = vadd.f32 0.0, %v617
          %v619 = vpop.f32.mrb[0].mxu0
          %v620 = vpop.f32.mrb[0].mxu0
          %v621 = vadd.f32 0.0, %v620
          %v622 = vpop.f32.mrb[0].mxu0
          %623 = vmatprep.mubr.bf16.mxu0 0
          %624 = vmatmul.mubr.bf16.gmra.mrb[0].mxu0 %v549
          %v625 = vpop.f32.mrb[0].mxu0
          %v626 = vadd.f32 0.0, %v625
          %v627 = vpop.f32.mrb[0].mxu0
          %v628 = vpop.f32.mrb[0].mxu0
          %v629 = vadd.f32 0.0, %v628
          %v630 = vpop.f32.mrb[0].mxu0
          %631 = vmatprep.mubr.bf16.mxu0 0
          %632 = vmatmul.mubr.bf16.gmra.mrb[0].mxu0 %v552
          %v633 = vpop.f32.mrb[0].mxu0
          %v634 = vadd.f32 0.0, %v633
          %v635 = vpop.f32.mrb[0].mxu0
          %v636 = vpop.f32.mrb[0].mxu0
          %v637 = vadd.f32 0.0, %v636
          %v638 = vpop.f32.mrb[0].mxu0
          %639 = vmatprep.mubr.bf16.mxu0 0
          %640 = vmatmul.mubr.bf16.gmra.mrb[0].mxu0 %v555
          %v641 = vpop.f32.mrb[0].mxu0
          %v642 = vadd.f32 0.0, %v641
          %v643 = vpop.f32.mrb[0].mxu0
          %v644 = vpop.f32.mrb[0].mxu0
          %v645 = vadd.f32 0.0, %v644
          %v646 = vpop.f32.mrb[0].mxu0
          %647 = vmatprep.mubr.bf16.mxu0 0
          %648 = vmatmul.mubr.bf16.gmra.mrb[0].mxu0 %v558
          %v649 = vpop.f32.mrb[0].mxu0
          %v650 = vadd.f32 0.0, %v649
          %v651 = vpop.f32.mrb[0].mxu0
          %v652 = vpop.f32.mrb[0].mxu0
          %v653 = vadd.f32 0.0, %v652
          %v654 = vpop.f32.mrb[0].mxu0
          %655 = vmatprep.mubr.bf16.mxu0 0
          %656 = vmatmul.mubr.bf16.gmra.mrb[0].mxu0 %v561
          %v657 = vpop.f32.mrb[0].mxu0
          %v658 = vadd.f32 0.0, %v657
          %v659 = vpop.f32.mrb[0].mxu0
          %v660 = vpop.f32.mrb[0].mxu0
          %v661 = vadd.f32 0.0, %v660
          %v662 = vpop.f32.mrb[0].mxu0
          %663 = vdwg.mxu0
          %vm664 = vcmask 15360
          %665 = vst.msk [vmem:[#allocation2] sm:$0xff] %vm664, %v602
          %666 = vst.msk [vmem:[#allocation2 + $0x8] sm:$0xff] %vm664, %v605
          %667 = vst.msk [vmem:[#allocation2 + $0x10] sm:$0xff] %vm664, %v610
          %668 = vst.msk [vmem:[#allocation2 + $0x18] sm:$0xff] %vm664, %v613
          %669 = vst.msk [vmem:[#allocation2 + $0x20] sm:$0xff] %vm664, %v618
          %670 = vst.msk [vmem:[#allocation2 + $0x28] sm:$0xff] %vm664, %v621
          %671 = vst.msk [vmem:[#allocation2 + $0x30] sm:$0xff] %vm664, %v626
          %672 = vst.msk [vmem:[#allocation2 + $0x38] sm:$0xff] %vm664, %v629
          %673 = vst.msk [vmem:[#allocation2 + $0x40] sm:$0xff] %vm664, %v634
          %674 = vst.msk [vmem:[#allocation2 + $0x48] sm:$0xff] %vm664, %v637
          %675 = vst.msk [vmem:[#allocation2 + $0x50] sm:$0xff] %vm664, %v642
          %676 = vst.msk [vmem:[#allocation2 + $0x58] sm:$0xff] %vm664, %v645
          %677 = vst.msk [vmem:[#allocation2 + $0x60] sm:$0xff] %vm664, %v650
          %678 = vst.msk [vmem:[#allocation2 + $0x68] sm:$0xff] %vm664, %v653
          %679 = vst.msk [vmem:[#allocation2 + $0x70] sm:$0xff] %vm664, %v658
          %680 = vst.msk [vmem:[#allocation2 + $0x78] sm:$0xff] %vm664, %v661
          %vm681 = vcmask 7168
          %682 = vst.msk [vmem:[#allocation3] sm:$0xff] %vm681, -inf
          %683 = vst.msk [vmem:[#allocation3 + $0x8] sm:$0xff] %vm681, -inf
          %684 = vst.msk [vmem:[#allocation3 + $0x10] sm:$0xff] %vm681, -inf
          %685 = vst.msk [vmem:[#allocation3 + $0x18] sm:$0xff] %vm681, -inf
          %686 = vst.msk [vmem:[#allocation3 + $0x20] sm:$0xff] %vm681, -inf
          %687 = vst.msk [vmem:[#allocation3 + $0x28] sm:$0xff] %vm681, -inf
          %688 = vst.msk [vmem:[#allocation3 + $0x30] sm:$0xff] %vm681, -inf
          %689 = vst.msk [vmem:[#allocation3 + $0x38] sm:$0xff] %vm681, -inf
          %690 = vst.msk [vmem:[#allocation3 + $0x40] sm:$0xff] %vm681, -inf
          %691 = vst.msk [vmem:[#allocation3 + $0x48] sm:$0xff] %vm681, -inf
          %692 = vst.msk [vmem:[#allocation3 + $0x50] sm:$0xff] %vm681, -inf
          %693 = vst.msk [vmem:[#allocation3 + $0x58] sm:$0xff] %vm681, -inf
          %694 = vst.msk [vmem:[#allocation3 + $0x60] sm:$0xff] %vm681, -inf
          %695 = vst.msk [vmem:[#allocation3 + $0x68] sm:$0xff] %vm681, -inf
          %696 = vst.msk [vmem:[#allocation3 + $0x70] sm:$0xff] %vm681, -inf
          %697 = vst.msk [vmem:[#allocation3 + $0x78] sm:$0xff] %vm681, -inf
          %698 = vst.msk [vmem:[#allocation4] sm:$0xff] %vm681, 0.0
          %699 = vst.msk [vmem:[#allocation4 + $0x8] sm:$0xff] %vm681, 0.0
          %700 = vst.msk [vmem:[#allocation4 + $0x10] sm:$0xff] %vm681, 0.0
          %701 = vst.msk [vmem:[#allocation4 + $0x18] sm:$0xff] %vm681, 0.0
          %702 = vst.msk [vmem:[#allocation4 + $0x20] sm:$0xff] %vm681, 0.0
          %703 = vst.msk [vmem:[#allocation4 + $0x28] sm:$0xff] %vm681, 0.0
          %704 = vst.msk [vmem:[#allocation4 + $0x30] sm:$0xff] %vm681, 0.0
          %705 = vst.msk [vmem:[#allocation4 + $0x38] sm:$0xff] %vm681, 0.0
          %706 = vst.msk [vmem:[#allocation4 + $0x40] sm:$0xff] %vm681, 0.0
          %707 = vst.msk [vmem:[#allocation4 + $0x48] sm:$0xff] %vm681, 0.0
          %708 = vst.msk [vmem:[#allocation4 + $0x50] sm:$0xff] %vm681, 0.0
          %709 = vst.msk [vmem:[#allocation4 + $0x58] sm:$0xff] %vm681, 0.0
          %710 = vst.msk [vmem:[#allocation4 + $0x60] sm:$0xff] %vm681, 0.0
          %711 = vst.msk [vmem:[#allocation4 + $0x68] sm:$0xff] %vm681, 0.0
          %712 = vst.msk [vmem:[#allocation4 + $0x70] sm:$0xff] %vm681, 0.0
          %713 = vst.msk [vmem:[#allocation4 + $0x78] sm:$0xff] %vm681, 0.0
          %714 = vst.msk [vmem:[#allocation5] sm:$0xff] %vm538, 0.0
          %715 = vst.msk [vmem:[#allocation5 + $0x8] sm:$0xff] %vm538, 0.0
          %716 = vst.msk [vmem:[#allocation5 + $0x10] sm:$0xff] %vm538, 0.0
          %717 = vst.msk [vmem:[#allocation5 + $0x18] sm:$0xff] %vm538, 0.0
          %718 = vst.msk [vmem:[#allocation5 + $0x20] sm:$0xff] %vm538, 0.0
          %719 = vst.msk [vmem:[#allocation5 + $0x28] sm:$0xff] %vm538, 0.0
          %720 = vst.msk [vmem:[#allocation5 + $0x30] sm:$0xff] %vm538, 0.0
          %721 = vst.msk [vmem:[#allocation5 + $0x38] sm:$0xff] %vm538, 0.0
          %722 = vst.msk [vmem:[#allocation5 + $0x40] sm:$0xff] %vm538, 0.0
          %723 = vst.msk [vmem:[#allocation5 + $0x48] sm:$0xff] %vm538, 0.0
          %724 = vst.msk [vmem:[#allocation5 + $0x50] sm:$0xff] %vm538, 0.0
          %725 = vst.msk [vmem:[#allocation5 + $0x58] sm:$0xff] %vm538, 0.0
          %726 = vst.msk [vmem:[#allocation5 + $0x60] sm:$0xff] %vm538, 0.0
          %727 = vst.msk [vmem:[#allocation5 + $0x68] sm:$0xff] %vm538, 0.0
          %728 = vst.msk [vmem:[#allocation5 + $0x70] sm:$0xff] %vm538, 0.0
          %729 = vst.msk [vmem:[#allocation5 + $0x78] sm:$0xff] %vm538, 0.0
        $region94: #{tpu_custom_call.1} parent=85 // pred_fallthru
          _
        %v730 = vld [vmem:[%s495] sm:$0xff]
        %v731 = vld [vmem:[%s495 + $0x8] sm:$0xff]
        %v732 = vld [vmem:[%s495 + $0x10] sm:$0xff]
        %v733 = vld [vmem:[%s495 + $0x18] sm:$0xff]
        %v734 = vld [vmem:[%s495 + $0x20] sm:$0xff]
        %v735 = vld [vmem:[%s495 + $0x28] sm:$0xff]
        %v736 = vld [vmem:[%s495 + $0x30] sm:$0xff]
        %v737 = vld [vmem:[%s495 + $0x38] sm:$0xff]
        %v738 = vld [vmem:[%s495 + $0x40] sm:$0xff]
        %v739 = vld [vmem:[%s495 + $0x48] sm:$0xff]
        %v740 = vld [vmem:[%s495 + $0x50] sm:$0xff]
        %v741 = vld [vmem:[%s495 + $0x58] sm:$0xff]
        %v742 = vld [vmem:[%s495 + $0x60] sm:$0xff]
        %v743 = vld [vmem:[%s495 + $0x68] sm:$0xff]
        %v744 = vld [vmem:[%s495 + $0x70] sm:$0xff]
        %v745 = vld [vmem:[%s495 + $0x78] sm:$0xff]
        %v746 = vpack.c.bf16 %v731, %v730
        %v747 = vpack.c.bf16 %v733, %v732
        %v748 = vpack.c.bf16 %v735, %v734
        %v749 = vpack.c.bf16 %v737, %v736
        %v750 = vpack.c.bf16 %v739, %v738
        %v751 = vpack.c.bf16 %v741, %v740
        %v752 = vpack.c.bf16 %v743, %v742
        %v753 = vpack.c.bf16 %v745, %v744
        %v754 = vld [vmem:[%s4] sm:$0xf]
        %vm755 = vcmask 64512
        %v757 = vsel %vm755, %v746, 0
        %v760 = vsel %vm755, %v747, 0
        %v763 = vsel %vm755, %v748, 0
        %v766 = vsel %vm755, %v749, 0
        %v769 = vsel %vm755, %v750, 0
        %v772 = vsel %vm755, %v751, 0
        %v775 = vsel %vm755, %v752, 0
        %v778 = vsel %vm755, %v753, 0
        %vm780 = vcmask 1043456
        %v782 = vsel %vm780, %v754, 0
        %784 = vmatprep.subr.bf16.mxu0 0
        %785 = vmatpush1.bf16.msra.mxu0 %v782
        %786 = vmatprep.subr.bf16.mxu0 0
        %787 = vmatpush1.bf16.msra.mxu0 0
        %788 = vmatprep.subr.bf16.mxu0 0
        %789 = vmatpush1.bf16.msra.mxu0 0
        %790 = vmatprep.subr.bf16.mxu0 0
        %791 = vmatpush1.bf16.msra.mxu0 0
        %792 = vmatprep.subr.bf16.mxu0 0
        %793 = vmatpush1.bf16.msra.mxu0 0
        %794 = vmatprep.subr.bf16.mxu0 0
        %795 = vmatpush1.bf16.msra.mxu0 0
        %796 = vmatprep.subr.bf16.mxu0 0
        %797 = vmatpush1.bf16.msra.mxu0 0
        %798 = vmatprep.subr.bf16.mxu0 0
        %799 = vmatpush1.bf16.msra.mxu0 0
        %800 = vmatprep.subr.bf16.mxu0 0
        %801 = vmatpush1.bf16.msra.mxu0 0
        %802 = vmatprep.subr.bf16.mxu0 0
        %803 = vmatpush1.bf16.msra.mxu0 0
        %804 = vmatprep.subr.bf16.mxu0 0
        %805 = vmatpush1.bf16.msra.mxu0 0
        %806 = vmatprep.subr.bf16.mxu0 0
        %807 = vmatpush1.bf16.msra.mxu0 0
        %808 = vmatprep.subr.bf16.mxu0 0
        %809 = vmatpush1.bf16.msra.mxu0 0
        %810 = vmatprep.subr.bf16.mxu0 0
        %811 = vmatpush1.bf16.msra.mxu0 0
        %812 = vmatprep.subr.bf16.mxu0 0
        %813 = vmatpush1.bf16.msra.mxu0 0
        %814 = vmatprep.subr.bf16.mxu0 0
        %815 = vmatpush1.bf16.msra.mxu0 0
        %816 = vmatprep.mubr.bf16.mxu0 0
        %817 = vmatmul.mubr.bf16.gmra.mrb[0].mxu0 %v757
        %v818 = vpop.f32.mrb[0].mxu0
        %v819 = vadd.f32 0.0, %v818
        %v820 = vpop.f32.mrb[0].mxu0
        %v821 = vpop.f32.mrb[0].mxu0
        %v822 = vadd.f32 0.0, %v821
        %v823 = vpop.f32.mrb[0].mxu0
        %824 = vmatprep.mubr.bf16.mxu0 0
        %825 = vmatmul.mubr.bf16.gmra.mrb[0].mxu0 %v760
        %v826 = vpop.f32.mrb[0].mxu0
        %v827 = vadd.f32 0.0, %v826
        %v828 = vpop.f32.mrb[0].mxu0
        %v829 = vpop.f32.mrb[0].mxu0
        %v830 = vadd.f32 0.0, %v829
        %v831 = vpop.f32.mrb[0].mxu0
        %832 = vmatprep.mubr.bf16.mxu0 0
        %833 = vmatmul.mubr.bf16.gmra.mrb[0].mxu0 %v763
        %v834 = vpop.f32.mrb[0].mxu0
        %v835 = vadd.f32 0.0, %v834
        %v836 = vpop.f32.mrb[0].mxu0
        %v837 = vpop.f32.mrb[0].mxu0
        %v838 = vadd.f32 0.0, %v837
        %v839 = vpop.f32.mrb[0].mxu0
        %840 = vmatprep.mubr.bf16.mxu0 0
        %841 = vmatmul.mubr.bf16.gmra.mrb[0].mxu0 %v766
        %v842 = vpop.f32.mrb[0].mxu0
        %v843 = vadd.f32 0.0, %v842
        %v844 = vpop.f32.mrb[0].mxu0
        %v845 = vpop.f32.mrb[0].mxu0
        %v846 = vadd.f32 0.0, %v845
        %v847 = vpop.f32.mrb[0].mxu0
        %848 = vmatprep.mubr.bf16.mxu0 0
        %849 = vmatmul.mubr.bf16.gmra.mrb[0].mxu0 %v769
        %v850 = vpop.f32.mrb[0].mxu0
        %v851 = vadd.f32 0.0, %v850
        %v852 = vpop.f32.mrb[0].mxu0
        %v853 = vpop.f32.mrb[0].mxu0
        %v854 = vadd.f32 0.0, %v853
        %v855 = vpop.f32.mrb[0].mxu0
        %856 = vmatprep.mubr.bf16.mxu0 0
        %857 = vmatmul.mubr.bf16.gmra.mrb[0].mxu0 %v772
        %v858 = vpop.f32.mrb[0].mxu0
        %v859 = vadd.f32 0.0, %v858
        %v860 = vpop.f32.mrb[0].mxu0
        %v861 = vpop.f32.mrb[0].mxu0
        %v862 = vadd.f32 0.0, %v861
        %v863 = vpop.f32.mrb[0].mxu0
        %864 = vmatprep.mubr.bf16.mxu0 0
        %865 = vmatmul.mubr.bf16.gmra.mrb[0].mxu0 %v775
        %v866 = vpop.f32.mrb[0].mxu0
        %v867 = vadd.f32 0.0, %v866
        %v868 = vpop.f32.mrb[0].mxu0
        %v869 = vpop.f32.mrb[0].mxu0
        %v870 = vadd.f32 0.0, %v869
        %v871 = vpop.f32.mrb[0].mxu0
        %872 = vmatprep.mubr.bf16.mxu0 0
        %873 = vmatmul.mubr.bf16.gmra.mrb[0].mxu0 %v778
        %v874 = vpop.f32.mrb[0].mxu0
        %v875 = vadd.f32 0.0, %v874
        %v876 = vpop.f32.mrb[0].mxu0
        %v877 = vpop.f32.mrb[0].mxu0
        %v878 = vadd.f32 0.0, %v877
        %v879 = vpop.f32.mrb[0].mxu0
        %880 = vdwg.mxu0
        %v881 = vpack.c.bf16 %v822, %v819
        %v882 = vpack.c.bf16 %v830, %v827
        %v883 = vpack.c.bf16 %v838, %v835
        %v884 = vpack.c.bf16 %v846, %v843
        %v885 = vpack.c.bf16 %v854, %v851
        %v886 = vpack.c.bf16 %v862, %v859
        %v887 = vpack.c.bf16 %v870, %v867
        %v888 = vpack.c.bf16 %v878, %v875
        %v889 = vld [vmem:[%s5] sm:$0xf]
        %v891 = vsel %vm780, %v889, 0
        %893 = vmatprep.subr.bf16.mxu0 0
        %894 = vmatpush1.bf16.msra.mxu0 %v891
        %895 = vmatprep.subr.bf16.mxu0 0
        %896 = vmatpush1.bf16.msra.mxu0 0
        %897 = vmatprep.subr.bf16.mxu0 0
        %898 = vmatpush1.bf16.msra.mxu0 0
        %899 = vmatprep.subr.bf16.mxu0 0
        %900 = vmatpush1.bf16.msra.mxu0 0
        %901 = vmatprep.subr.bf16.mxu0 0
        %902 = vmatpush1.bf16.msra.mxu0 0
        %903 = vmatprep.subr.bf16.mxu0 0
        %904 = vmatpush1.bf16.msra.mxu0 0
        %905 = vmatprep.subr.bf16.mxu0 0
        %906 = vmatpush1.bf16.msra.mxu0 0
        %907 = vmatprep.subr.bf16.mxu0 0
        %908 = vmatpush1.bf16.msra.mxu0 0
        %909 = vmatprep.subr.bf16.mxu0 0
        %910 = vmatpush1.bf16.msra.mxu0 0
        %911 = vmatprep.subr.bf16.mxu0 0
        %912 = vmatpush1.bf16.msra.mxu0 0
        %913 = vmatprep.subr.bf16.mxu0 0
        %914 = vmatpush1.bf16.msra.mxu0 0
        %915 = vmatprep.subr.bf16.mxu0 0
        %916 = vmatpush1.bf16.msra.mxu0 0
        %917 = vmatprep.subr.bf16.mxu0 0
        %918 = vmatpush1.bf16.msra.mxu0 0
        %919 = vmatprep.subr.bf16.mxu0 0
        %920 = vmatpush1.bf16.msra.mxu0 0
        %921 = vmatprep.subr.bf16.mxu0 0
        %922 = vmatpush1.bf16.msra.mxu0 0
        %923 = vmatprep.subr.bf16.mxu0 0
        %924 = vmatpush1.bf16.msra.mxu0 0
        %925 = vmatprep.mubr.bf16.mxu0 0
        %926 = vmatmul.mubr.bf16.gmra.mrb[0].mxu0 %v757
        %v927 = vpop.f32.mrb[0].mxu0
        %v928 = vadd.f32 0.0, %v927
        %v929 = vpop.f32.mrb[0].mxu0
        %v930 = vpop.f32.mrb[0].mxu0
        %v931 = vadd.f32 0.0, %v930
        %v932 = vpop.f32.mrb[0].mxu0
        %933 = vmatprep.mubr.bf16.mxu0 0
        %934 = vmatmul.mubr.bf16.gmra.mrb[0].mxu0 %v760
        %v935 = vpop.f32.mrb[0].mxu0
        %v936 = vadd.f32 0.0, %v935
        %v937 = vpop.f32.mrb[0].mxu0
        %v938 = vpop.f32.mrb[0].mxu0
        %v939 = vadd.f32 0.0, %v938
        %v940 = vpop.f32.mrb[0].mxu0
        %941 = vmatprep.mubr.bf16.mxu0 0
        %942 = vmatmul.mubr.bf16.gmra.mrb[0].mxu0 %v763
        %v943 = vpop.f32.mrb[0].mxu0
        %v944 = vadd.f32 0.0, %v943
        %v945 = vpop.f32.mrb[0].mxu0
        %v946 = vpop.f32.mrb[0].mxu0
        %v947 = vadd.f32 0.0, %v946
        %v948 = vpop.f32.mrb[0].mxu0
        %949 = vmatprep.mubr.bf16.mxu0 0
        %950 = vmatmul.mubr.bf16.gmra.mrb[0].mxu0 %v766
        %v951 = vpop.f32.mrb[0].mxu0
        %v952 = vadd.f32 0.0, %v951
        %v953 = vpop.f32.mrb[0].mxu0
        %v954 = vpop.f32.mrb[0].mxu0
        %v955 = vadd.f32 0.0, %v954
        %v956 = vpop.f32.mrb[0].mxu0
        %957 = vmatprep.mubr.bf16.mxu0 0
        %958 = vmatmul.mubr.bf16.gmra.mrb[0].mxu0 %v769
        %v959 = vpop.f32.mrb[0].mxu0
        %v960 = vadd.f32 0.0, %v959
        %v961 = vpop.f32.mrb[0].mxu0
        %v962 = vpop.f32.mrb[0].mxu0
        %v963 = vadd.f32 0.0, %v962
        %v964 = vpop.f32.mrb[0].mxu0
        %965 = vmatprep.mubr.bf16.mxu0 0
        %966 = vmatmul.mubr.bf16.gmra.mrb[0].mxu0 %v772
        %v967 = vpop.f32.mrb[0].mxu0
        %v968 = vadd.f32 0.0, %v967
        %v969 = vpop.f32.mrb[0].mxu0
        %v970 = vpop.f32.mrb[0].mxu0
        %v971 = vadd.f32 0.0, %v970
        %v972 = vpop.f32.mrb[0].mxu0
        %973 = vmatprep.mubr.bf16.mxu0 0
        %974 = vmatmul.mubr.bf16.gmra.mrb[0].mxu0 %v775
        %v975 = vpop.f32.mrb[0].mxu0
        %v976 = vadd.f32 0.0, %v975
        %v977 = vpop.f32.mrb[0].mxu0
        %v978 = vpop.f32.mrb[0].mxu0
        %v979 = vadd.f32 0.0, %v978
        %v980 = vpop.f32.mrb[0].mxu0
        %981 = vmatprep.mubr.bf16.mxu0 0
        %982 = vmatmul.mubr.bf16.gmra.mrb[0].mxu0 %v778
        %v983 = vpop.f32.mrb[0].mxu0
        %v984 = vadd.f32 0.0, %v983
        %v985 = vpop.f32.mrb[0].mxu0
        %v986 = vpop.f32.mrb[0].mxu0
        %v987 = vadd.f32 0.0, %v986
        %v988 = vpop.f32.mrb[0].mxu0
        %989 = vdwg.mxu0
        %v990 = vpack.c.bf16 %v931, %v928
        %v991 = vpack.c.bf16 %v939, %v936
        %v992 = vpack.c.bf16 %v947, %v944
        %v993 = vpack.c.bf16 %v955, %v952
        %v994 = vpack.c.bf16 %v963, %v960
        %v995 = vpack.c.bf16 %v971, %v968
        %v996 = vpack.c.bf16 %v979, %v976
        %v997 = vpack.c.bf16 %v987, %v984
        %v998 = vld [vmem:[#allocation2] sm:$0xff]
        %v999 = vld [vmem:[#allocation2 + $0x8] sm:$0xff]
        %v1000 = vld [vmem:[#allocation2 + $0x10] sm:$0xff]
        %v1001 = vld [vmem:[#allocation2 + $0x18] sm:$0xff]
        %v1002 = vld [vmem:[#allocation2 + $0x20] sm:$0xff]
        %v1003 = vld [vmem:[#allocation2 + $0x28] sm:$0xff]
        %v1004 = vld [vmem:[#allocation2 + $0x30] sm:$0xff]
        %v1005 = vld [vmem:[#allocation2 + $0x38] sm:$0xff]
        %v1006 = vld [vmem:[#allocation2 + $0x40] sm:$0xff]
        %v1007 = vld [vmem:[#allocation2 + $0x48] sm:$0xff]
        %v1008 = vld [vmem:[#allocation2 + $0x50] sm:$0xff]
        %v1009 = vld [vmem:[#allocation2 + $0x58] sm:$0xff]
        %v1010 = vld [vmem:[#allocation2 + $0x60] sm:$0xff]
        %v1011 = vld [vmem:[#allocation2 + $0x68] sm:$0xff]
        %v1012 = vld [vmem:[#allocation2 + $0x70] sm:$0xff]
        %v1013 = vld [vmem:[#allocation2 + $0x78] sm:$0xff]
        %v1014 = vpack.c.bf16 %v999, %v998
        %v1015 = vpack.c.bf16 %v1001, %v1000
        %v1016 = vpack.c.bf16 %v1003, %v1002
        %v1017 = vpack.c.bf16 %v1005, %v1004
        %v1018 = vpack.c.bf16 %v1007, %v1006
        %v1019 = vpack.c.bf16 %v1009, %v1008
        %v1020 = vpack.c.bf16 %v1011, %v1010
        %v1021 = vpack.c.bf16 %v1013, %v1012
        %vm1022 = vcmask 15360
        %v1024 = vsel %vm1022, %v1014, 0
        %v1027 = vsel %vm1022, %v1015, 0
        %v1030 = vsel %vm1022, %v1016, 0
        %v1033 = vsel %vm1022, %v1017, 0
        %v1036 = vsel %vm1022, %v1018, 0
        %v1039 = vsel %vm1022, %v1019, 0
        %v1042 = vsel %vm1022, %v1020, 0
        %v1045 = vsel %vm1022, %v1021, 0
        %v1048 = vsel %vm1022, %v881, 0
        %v1051 = vsel %vm1022, %v882, 0
        %v1054 = vsel %vm1022, %v883, 0
        %v1057 = vsel %vm1022, %v884, 0
        %v1060 = vsel %vm1022, %v885, 0
        %v1063 = vsel %vm1022, %v886, 0
        %v1066 = vsel %vm1022, %v887, 0
        %v1069 = vsel %vm1022, %v888, 0
        %1071 = vmatprep.subr.bf16.mxu0 0
        %1072 = vmatpush1.bf16.xpose.msra.mxu0 %v1048
        %1073 = vmatprep.subr.bf16.mxu0 0
        %1074 = vmatpush1.bf16.xpose.msra.mxu0 %v1051
        %1075 = vmatprep.subr.bf16.mxu0 0
        %1076 = vmatpush1.bf16.xpose.msra.mxu0 %v1054
        %1077 = vmatprep.subr.bf16.mxu0 0
        %1078 = vmatpush1.bf16.xpose.msra.mxu0 %v1057
        %1079 = vmatprep.subr.bf16.mxu0 0
        %1080 = vmatpush1.bf16.xpose.msra.mxu0 %v1060
        %1081 = vmatprep.subr.bf16.mxu0 0
        %1082 = vmatpush1.bf16.xpose.msra.mxu0 %v1063
        %1083 = vmatprep.subr.bf16.mxu0 0
        %1084 = vmatpush1.bf16.xpose.msra.mxu0 %v1066
        %1085 = vmatprep.subr.bf16.mxu0 0
        %1086 = vmatpush1.bf16.xpose.msra.mxu0 %v1069
        %1087 = vmatprep.subr.bf16.mxu0 0
        %1088 = vmatpush1.bf16.xpose.msra.mxu0 0
        %1089 = vmatprep.subr.bf16.mxu0 0
        %1090 = vmatpush1.bf16.xpose.msra.mxu0 0
        %1091 = vmatprep.subr.bf16.mxu0 0
        %1092 = vmatpush1.bf16.xpose.msra.mxu0 0
        %1093 = vmatprep.subr.bf16.mxu0 0
        %1094 = vmatpush1.bf16.xpose.msra.mxu0 0
        %1095 = vmatprep.subr.bf16.mxu0 0
        %1096 = vmatpush1.bf16.xpose.msra.mxu0 0
        %1097 = vmatprep.subr.bf16.mxu0 0
        %1098 = vmatpush1.bf16.xpose.msra.mxu0 0
        %1099 = vmatprep.subr.bf16.mxu0 0
        %1100 = vmatpush1.bf16.xpose.msra.mxu0 0
        %1101 = vmatprep.subr.bf16.mxu0 0
        %1102 = vmatpush1.bf16.xpose.msra.mxu0 0
        %1103 = vmatprep.mubr.bf16.mxu0 0
        %1104 = vmatmul.mubr.bf16.gmra.mrb[0].mxu0 %v1024
        %v1105 = vpop.f32.mrb[0].mxu0
        %v1106 = vadd.f32 0.0, %v1105
        %v1107 = vpop.f32.mrb[0].mxu0
        %v1108 = vpop.f32.mrb[0].mxu0
        %v1109 = vadd.f32 0.0, %v1108
        %v1110 = vpop.f32.mrb[0].mxu0
        %1111 = vmatprep.mubr.bf16.mxu0 0
        %1112 = vmatmul.mubr.bf16.gmra.mrb[0].mxu0 %v1027
        %v1113 = vpop.f32.mrb[0].mxu0
        %v1114 = vadd.f32 0.0, %v1113
        %v1115 = vpop.f32.mrb[0].mxu0
        %v1116 = vpop.f32.mrb[0].mxu0
        %v1117 = vadd.f32 0.0, %v1116
        %v1118 = vpop.f32.mrb[0].mxu0
        %1119 = vmatprep.mubr.bf16.mxu0 0
        %1120 = vmatmul.mubr.bf16.gmra.mrb[0].mxu0 %v1030
        %v1121 = vpop.f32.mrb[0].mxu0
        %v1122 = vadd.f32 0.0, %v1121
        %v1123 = vpop.f32.mrb[0].mxu0
        %v1124 = vpop.f32.mrb[0].mxu0
        %v1125 = vadd.f32 0.0, %v1124
        %v1126 = vpop.f32.mrb[0].mxu0
        %1127 = vmatprep.mubr.bf16.mxu0 0
        %1128 = vmatmul.mubr.bf16.gmra.mrb[0].mxu0 %v1033
        %v1129 = vpop.f32.mrb[0].mxu0
        %v1130 = vadd.f32 0.0, %v1129
        %v1131 = vpop.f32.mrb[0].mxu0
        %v1132 = vpop.f32.mrb[0].mxu0
        %v1133 = vadd.f32 0.0, %v1132
        %v1134 = vpop.f32.mrb[0].mxu0
        %1135 = vmatprep.mubr.bf16.mxu0 0
        %1136 = vmatmul.mubr.bf16.gmra.mrb[0].mxu0 %v1036
        %v1137 = vpop.f32.mrb[0].mxu0
        %v1138 = vadd.f32 0.0, %v1137
        %v1139 = vpop.f32.mrb[0].mxu0
        %v1140 = vpop.f32.mrb[0].mxu0
        %v1141 = vadd.f32 0.0, %v1140
        %v1142 = vpop.f32.mrb[0].mxu0
        %1143 = vmatprep.mubr.bf16.mxu0 0
        %1144 = vmatmul.mubr.bf16.gmra.mrb[0].mxu0 %v1039
        %v1145 = vpop.f32.mrb[0].mxu0
        %v1146 = vadd.f32 0.0, %v1145
        %v1147 = vpop.f32.mrb[0].mxu0
        %v1148 = vpop.f32.mrb[0].mxu0
        %v1149 = vadd.f32 0.0, %v1148
        %v1150 = vpop.f32.mrb[0].mxu0
        %1151 = vmatprep.mubr.bf16.mxu0 0
        %1152 = vmatmul.mubr.bf16.gmra.mrb[0].mxu0 %v1042
        %v1153 = vpop.f32.mrb[0].mxu0
        %v1154 = vadd.f32 0.0, %v1153
        %v1155 = vpop.f32.mrb[0].mxu0
        %v1156 = vpop.f32.mrb[0].mxu0
        %v1157 = vadd.f32 0.0, %v1156
        %v1158 = vpop.f32.mrb[0].mxu0
        %1159 = vmatprep.mubr.bf16.mxu0 0
        %1160 = vmatmul.mubr.bf16.gmra.mrb[0].mxu0 %v1045
        %v1161 = vpop.f32.mrb[0].mxu0
        %v1162 = vadd.f32 0.0, %v1161
        %v1163 = vpop.f32.mrb[0].mxu0
        %v1164 = vpop.f32.mrb[0].mxu0
        %v1165 = vadd.f32 0.0, %v1164
        %v1166 = vpop.f32.mrb[0].mxu0
        %1167 = vdwg.mxu0
        %v1168 = vld [vmem:[%s424] sm:$0xff]
        %v1169 = vld [vmem:[%s424 + $0x8] sm:$0xff]
        %v1170 = vld [vmem:[%s424 + $0x10] sm:$0xff]
        %v1171 = vld [vmem:[%s424 + $0x18] sm:$0xff]
        %v1172 = vld [vmem:[%s424 + $0x20] sm:$0xff]
        %v1173 = vld [vmem:[%s424 + $0x28] sm:$0xff]
        %v1174 = vld [vmem:[%s424 + $0x30] sm:$0xff]
        %v1175 = vld [vmem:[%s424 + $0x38] sm:$0xff]
        %v1176 = vld [vmem:[%s424 + $0x40] sm:$0xff]
        %v1177 = vld [vmem:[%s424 + $0x48] sm:$0xff]
        %v1178 = vld [vmem:[%s424 + $0x50] sm:$0xff]
        %v1179 = vld [vmem:[%s424 + $0x58] sm:$0xff]
        %v1180 = vld [vmem:[%s424 + $0x60] sm:$0xff]
        %v1181 = vld [vmem:[%s424 + $0x68] sm:$0xff]
        %v1182 = vld [vmem:[%s424 + $0x70] sm:$0xff]
        %v1183 = vld [vmem:[%s424 + $0x78] sm:$0xff]
        %v1184 = vmul.f32 %v1106, %v1168
        %v1185 = vmul.f32 %v1109, %v1169
        %v1186 = vmul.f32 %v1114, %v1170
        %v1187 = vmul.f32 %v1117, %v1171
        %v1188 = vmul.f32 %v1122, %v1172
        %v1189 = vmul.f32 %v1125, %v1173
        %v1190 = vmul.f32 %v1130, %v1174
        %v1191 = vmul.f32 %v1133, %v1175
        %v1192 = vmul.f32 %v1138, %v1176
        %v1193 = vmul.f32 %v1141, %v1177
        %v1194 = vmul.f32 %v1146, %v1178
        %v1195 = vmul.f32 %v1149, %v1179
        %v1196 = vmul.f32 %v1154, %v1180
        %v1197 = vmul.f32 %v1157, %v1181
        %v1198 = vmul.f32 %v1162, %v1182
        %v1199 = vmul.f32 %v1165, %v1183
        %v1200 = vld [vmem:[#allocation3] sm:$0xff]
        %v1201 = vld [vmem:[#allocation3 + $0x8] sm:$0xff]
        %v1202 = vld [vmem:[#allocation3 + $0x10] sm:$0xff]
        %v1203 = vld [vmem:[#allocation3 + $0x18] sm:$0xff]
        %v1204 = vld [vmem:[#allocation3 + $0x20] sm:$0xff]
        %v1205 = vld [vmem:[#allocation3 + $0x28] sm:$0xff]
        %v1206 = vld [vmem:[#allocation3 + $0x30] sm:$0xff]
        %v1207 = vld [vmem:[#allocation3 + $0x38] sm:$0xff]
        %v1208 = vld [vmem:[#allocation3 + $0x40] sm:$0xff]
        %v1209 = vld [vmem:[#allocation3 + $0x48] sm:$0xff]
        %v1210 = vld [vmem:[#allocation3 + $0x50] sm:$0xff]
        %v1211 = vld [vmem:[#allocation3 + $0x58] sm:$0xff]
        %v1212 = vld [vmem:[#allocation3 + $0x60] sm:$0xff]
        %v1213 = vld [vmem:[#allocation3 + $0x68] sm:$0xff]
        %v1214 = vld [vmem:[#allocation3 + $0x70] sm:$0xff]
        %v1215 = vld [vmem:[#allocation3 + $0x78] sm:$0xff]
        %1216 = vmax.xlane.f32.xlu0 %v1184
        %v1217 = vpop.xlane.xlu0 %1216
        %1218 = vmax.xlane.f32.xlu0 %v1185
        %v1219 = vpop.xlane.xlu0 %1218
        %1220 = vmax.xlane.f32.xlu0 %v1186
        %v1221 = vpop.xlane.xlu0 %1220
        %1222 = vmax.xlane.f32.xlu0 %v1187
        %v1223 = vpop.xlane.xlu0 %1222
        %1224 = vmax.xlane.f32.xlu0 %v1188
        %v1225 = vpop.xlane.xlu0 %1224
        %1226 = vmax.xlane.f32.xlu0 %v1189
        %v1227 = vpop.xlane.xlu0 %1226
        %1228 = vmax.xlane.f32.xlu0 %v1190
        %v1229 = vpop.xlane.xlu0 %1228
        %1230 = vmax.xlane.f32.xlu0 %v1191
        %v1231 = vpop.xlane.xlu0 %1230
        %1232 = vmax.xlane.f32.xlu0 %v1192
        %v1233 = vpop.xlane.xlu0 %1232
        %1234 = vmax.xlane.f32.xlu0 %v1193
        %v1235 = vpop.xlane.xlu0 %1234
        %1236 = vmax.xlane.f32.xlu0 %v1194
        %v1237 = vpop.xlane.xlu0 %1236
        %1238 = vmax.xlane.f32.xlu0 %v1195
        %v1239 = vpop.xlane.xlu0 %1238
        %1240 = vmax.xlane.f32.xlu0 %v1196
        %v1241 = vpop.xlane.xlu0 %1240
        %1242 = vmax.xlane.f32.xlu0 %v1197
        %v1243 = vpop.xlane.xlu0 %1242
        %1244 = vmax.xlane.f32.xlu0 %v1198
        %v1245 = vpop.xlane.xlu0 %1244
        %1246 = vmax.xlane.f32.xlu0 %v1199
        %v1247 = vpop.xlane.xlu0 %1246
        %v1248 = vmax.f32 %v1200, %v1217
        %v1249 = vmax.f32 %v1201, %v1219
        %v1250 = vmax.f32 %v1202, %v1221
        %v1251 = vmax.f32 %v1203, %v1223
        %v1252 = vmax.f32 %v1204, %v1225
        %v1253 = vmax.f32 %v1205, %v1227
        %v1254 = vmax.f32 %v1206, %v1229
        %v1255 = vmax.f32 %v1207, %v1231
        %v1256 = vmax.f32 %v1208, %v1233
        %v1257 = vmax.f32 %v1209, %v1235
        %v1258 = vmax.f32 %v1210, %v1237
        %v1259 = vmax.f32 %v1211, %v1239
        %v1260 = vmax.f32 %v1212, %v1241
        %v1261 = vmax.f32 %v1213, %v1243
        %v1262 = vmax.f32 %v1214, %v1245
        %v1263 = vmax.f32 %v1215, %v1247
        %v1264 = vsub.f32 %v1200, %v1248
        %v1265 = vsub.f32 %v1201, %v1249
        %v1266 = vsub.f32 %v1202, %v1250
        %v1267 = vsub.f32 %v1203, %v1251
        %v1268 = vsub.f32 %v1204, %v1252
        %v1269 = vsub.f32 %v1205, %v1253
        %v1270 = vsub.f32 %v1206, %v1254
        %v1271 = vsub.f32 %v1207, %v1255
        %v1272 = vsub.f32 %v1208, %v1256
        %v1273 = vsub.f32 %v1209, %v1257
        %v1274 = vsub.f32 %v1210, %v1258
        %v1275 = vsub.f32 %v1211, %v1259
        %v1276 = vsub.f32 %v1212, %v1260
        %v1277 = vsub.f32 %v1213, %v1261
        %v1278 = vsub.f32 %v1214, %v1262
        %v1279 = vsub.f32 %v1215, %v1263
        %v1280 = vmul.f32 %v1264, 1.442695
        %v1281 = vpow.pop %v1280
        %v1282 = vmul.f32 %v1265, 1.442695
        %v1283 = vpow.pop %v1282
        %v1284 = vmul.f32 %v1266, 1.442695
        %v1285 = vpow.pop %v1284
        %v1286 = vmul.f32 %v1267, 1.442695
        %v1287 = vpow.pop %v1286
        %v1288 = vmul.f32 %v1268, 1.442695
        %v1289 = vpow.pop %v1288
        %v1290 = vmul.f32 %v1269, 1.442695
        %v1291 = vpow.pop %v1290
        %v1292 = vmul.f32 %v1270, 1.442695
        %v1293 = vpow.pop %v1292
        %v1294 = vmul.f32 %v1271, 1.442695
        %v1295 = vpow.pop %v1294
        %v1296 = vmul.f32 %v1272, 1.442695
        %v1297 = vpow.pop %v1296
        %v1298 = vmul.f32 %v1273, 1.442695
        %v1299 = vpow.pop %v1298
        %v1300 = vmul.f32 %v1274, 1.442695
        %v1301 = vpow.pop %v1300
        %v1302 = vmul.f32 %v1275, 1.442695
        %v1303 = vpow.pop %v1302
        %v1304 = vmul.f32 %v1276, 1.442695
        %v1305 = vpow.pop %v1304
        %v1306 = vmul.f32 %v1277, 1.442695
        %v1307 = vpow.pop %v1306
        %v1308 = vmul.f32 %v1278, 1.442695
        %v1309 = vpow.pop %v1308
        %v1310 = vmul.f32 %v1279, 1.442695
        %v1311 = vpow.pop %v1310
        %1313 = vset.pattern.permute.xlu0 0
        %1314 = vperm.xlu0 %1313, %v1248
        %v1315 = vpop.permute.xlu0 %1314
        %1318 = vset.pattern.permute.xlu0 0
        %1319 = vperm.xlu0 %1318, %v1249
        %v1320 = vpop.permute.xlu0 %1319
        %1323 = vset.pattern.permute.xlu0 0
        %1324 = vperm.xlu0 %1323, %v1250
        %v1325 = vpop.permute.xlu0 %1324
        %1328 = vset.pattern.permute.xlu0 0
        %1329 = vperm.xlu0 %1328, %v1251
        %v1330 = vpop.permute.xlu0 %1329
        %1333 = vset.pattern.permute.xlu0 0
        %1334 = vperm.xlu0 %1333, %v1252
        %v1335 = vpop.permute.xlu0 %1334
        %1338 = vset.pattern.permute.xlu0 0
        %1339 = vperm.xlu0 %1338, %v1253
        %v1340 = vpop.permute.xlu0 %1339
        %1343 = vset.pattern.permute.xlu0 0
        %1344 = vperm.xlu0 %1343, %v1254
        %v1345 = vpop.permute.xlu0 %1344
        %1348 = vset.pattern.permute.xlu0 0
        %1349 = vperm.xlu0 %1348, %v1255
        %v1350 = vpop.permute.xlu0 %1349
        %1353 = vset.pattern.permute.xlu0 0
        %1354 = vperm.xlu0 %1353, %v1256
        %v1355 = vpop.permute.xlu0 %1354
        %1358 = vset.pattern.permute.xlu0 0
        %1359 = vperm.xlu0 %1358, %v1257
        %v1360 = vpop.permute.xlu0 %1359
        %1363 = vset.pattern.permute.xlu0 0
        %1364 = vperm.xlu0 %1363, %v1258
        %v1365 = vpop.permute.xlu0 %1364
        %1368 = vset.pattern.permute.xlu0 0
        %1369 = vperm.xlu0 %1368, %v1259
        %v1370 = vpop.permute.xlu0 %1369
        %1373 = vset.pattern.permute.xlu0 0
        %1374 = vperm.xlu0 %1373, %v1260
        %v1375 = vpop.permute.xlu0 %1374
        %1378 = vset.pattern.permute.xlu0 0
        %1379 = vperm.xlu0 %1378, %v1261
        %v1380 = vpop.permute.xlu0 %1379
        %1383 = vset.pattern.permute.xlu0 0
        %1384 = vperm.xlu0 %1383, %v1262
        %v1385 = vpop.permute.xlu0 %1384
        %1388 = vset.pattern.permute.xlu0 0
        %1389 = vperm.xlu0 %1388, %v1263
        %v1390 = vpop.permute.xlu0 %1389
        %v1392 = vsub.f32 %v1184, %v1315
        %v1393 = vsub.f32 %v1185, %v1320
        %v1394 = vsub.f32 %v1186, %v1325
        %v1395 = vsub.f32 %v1187, %v1330
        %v1396 = vsub.f32 %v1188, %v1335
        %v1397 = vsub.f32 %v1189, %v1340
        %v1398 = vsub.f32 %v1190, %v1345
        %v1399 = vsub.f32 %v1191, %v1350
        %v1400 = vsub.f32 %v1192, %v1355
        %v1401 = vsub.f32 %v1193, %v1360
        %v1402 = vsub.f32 %v1194, %v1365
        %v1403 = vsub.f32 %v1195, %v1370
        %v1404 = vsub.f32 %v1196, %v1375
        %v1405 = vsub.f32 %v1197, %v1380
        %v1406 = vsub.f32 %v1198, %v1385
        %v1407 = vsub.f32 %v1199, %v1390
        %v1408 = vmul.f32 %v1392, 1.442695
        %v1409 = vpow.pop %v1408
        %v1410 = vmul.f32 %v1393, 1.442695
        %v1411 = vpow.pop %v1410
        %v1412 = vmul.f32 %v1394, 1.442695
        %v1413 = vpow.pop %v1412
        %v1414 = vmul.f32 %v1395, 1.442695
        %v1415 = vpow.pop %v1414
        %v1416 = vmul.f32 %v1396, 1.442695
        %v1417 = vpow.pop %v1416
        %v1418 = vmul.f32 %v1397, 1.442695
        %v1419 = vpow.pop %v1418
        %v1420 = vmul.f32 %v1398, 1.442695
        %v1421 = vpow.pop %v1420
        %v1422 = vmul.f32 %v1399, 1.442695
        %v1423 = vpow.pop %v1422
        %v1424 = vmul.f32 %v1400, 1.442695
        %v1425 = vpow.pop %v1424
        %v1426 = vmul.f32 %v1401, 1.442695
        %v1427 = vpow.pop %v1426
        %v1428 = vmul.f32 %v1402, 1.442695
        %v1429 = vpow.pop %v1428
        %v1430 = vmul.f32 %v1403, 1.442695
        %v1431 = vpow.pop %v1430
        %v1432 = vmul.f32 %v1404, 1.442695
        %v1433 = vpow.pop %v1432
        %v1434 = vmul.f32 %v1405, 1.442695
        %v1435 = vpow.pop %v1434
        %v1436 = vmul.f32 %v1406, 1.442695
        %v1437 = vpow.pop %v1436
        %v1438 = vmul.f32 %v1407, 1.442695
        %v1439 = vpow.pop %v1438
        %v1440 = vld [vmem:[#allocation4] sm:$0xff]
        %v1441 = vld [vmem:[#allocation4 + $0x8] sm:$0xff]
        %v1442 = vld [vmem:[#allocation4 + $0x10] sm:$0xff]
        %v1443 = vld [vmem:[#allocation4 + $0x18] sm:$0xff]
        %v1444 = vld [vmem:[#allocation4 + $0x20] sm:$0xff]
        %v1445 = vld [vmem:[#allocation4 + $0x28] sm:$0xff]
        %v1446 = vld [vmem:[#allocation4 + $0x30] sm:$0xff]
        %v1447 = vld [vmem:[#allocation4 + $0x38] sm:$0xff]
        %v1448 = vld [vmem:[#allocation4 + $0x40] sm:$0xff]
        %v1449 = vld [vmem:[#allocation4 + $0x48] sm:$0xff]
        %v1450 = vld [vmem:[#allocation4 + $0x50] sm:$0xff]
        %v1451 = vld [vmem:[#allocation4 + $0x58] sm:$0xff]
        %v1452 = vld [vmem:[#allocation4 + $0x60] sm:$0xff]
        %v1453 = vld [vmem:[#allocation4 + $0x68] sm:$0xff]
        %v1454 = vld [vmem:[#allocation4 + $0x70] sm:$0xff]
        %v1455 = vld [vmem:[#allocation4 + $0x78] sm:$0xff]
        %v1456 = vmul.f32 %v1281, %v1440
        %v1457 = vmul.f32 %v1283, %v1441
        %v1458 = vmul.f32 %v1285, %v1442
        %v1459 = vmul.f32 %v1287, %v1443
        %v1460 = vmul.f32 %v1289, %v1444
        %v1461 = vmul.f32 %v1291, %v1445
        %v1462 = vmul.f32 %v1293, %v1446
        %v1463 = vmul.f32 %v1295, %v1447
        %v1464 = vmul.f32 %v1297, %v1448
        %v1465 = vmul.f32 %v1299, %v1449
        %v1466 = vmul.f32 %v1301, %v1450
        %v1467 = vmul.f32 %v1303, %v1451
        %v1468 = vmul.f32 %v1305, %v1452
        %v1469 = vmul.f32 %v1307, %v1453
        %v1470 = vmul.f32 %v1309, %v1454
        %v1471 = vmul.f32 %v1311, %v1455
        %1472 = vadd.xlane.f32.xlu0 %v1409
        %v1473 = vpop.xlane.xlu0 %1472
        %1474 = vadd.xlane.f32.xlu0 %v1411
        %v1475 = vpop.xlane.xlu0 %1474
        %1476 = vadd.xlane.f32.xlu0 %v1413
        %v1477 = vpop.xlane.xlu0 %1476
        %1478 = vadd.xlane.f32.xlu0 %v1415
        %v1479 = vpop.xlane.xlu0 %1478
        %1480 = vadd.xlane.f32.xlu0 %v1417
        %v1481 = vpop.xlane.xlu0 %1480
        %1482 = vadd.xlane.f32.xlu0 %v1419
        %v1483 = vpop.xlane.xlu0 %1482
        %1484 = vadd.xlane.f32.xlu0 %v1421
        %v1485 = vpop.xlane.xlu0 %1484
        %1486 = vadd.xlane.f32.xlu0 %v1423
        %v1487 = vpop.xlane.xlu0 %1486
        %1488 = vadd.xlane.f32.xlu0 %v1425
        %v1489 = vpop.xlane.xlu0 %1488
        %1490 = vadd.xlane.f32.xlu0 %v1427
        %v1491 = vpop.xlane.xlu0 %1490
        %1492 = vadd.xlane.f32.xlu0 %v1429
        %v1493 = vpop.xlane.xlu0 %1492
        %1494 = vadd.xlane.f32.xlu0 %v1431
        %v1495 = vpop.xlane.xlu0 %1494
        %1496 = vadd.xlane.f32.xlu0 %v1433
        %v1497 = vpop.xlane.xlu0 %1496
        %1498 = vadd.xlane.f32.xlu0 %v1435
        %v1499 = vpop.xlane.xlu0 %1498
        %1500 = vadd.xlane.f32.xlu0 %v1437
        %v1501 = vpop.xlane.xlu0 %1500
        %1502 = vadd.xlane.f32.xlu0 %v1439
        %v1503 = vpop.xlane.xlu0 %1502
        %v1504 = vadd.f32 %v1456, %v1473
        %v1505 = vadd.f32 %v1457, %v1475
        %v1506 = vadd.f32 %v1458, %v1477
        %v1507 = vadd.f32 %v1459, %v1479
        %v1508 = vadd.f32 %v1460, %v1481
        %v1509 = vadd.f32 %v1461, %v1483
        %v1510 = vadd.f32 %v1462, %v1485
        %v1511 = vadd.f32 %v1463, %v1487
        %v1512 = vadd.f32 %v1464, %v1489
        %v1513 = vadd.f32 %v1465, %v1491
        %v1514 = vadd.f32 %v1466, %v1493
        %v1515 = vadd.f32 %v1467, %v1495
        %v1516 = vadd.f32 %v1468, %v1497
        %v1517 = vadd.f32 %v1469, %v1499
        %v1518 = vadd.f32 %v1470, %v1501
        %v1519 = vadd.f32 %v1471, %v1503
        %vm1520 = vcmask 7168
        %1521 = vst.msk [vmem:[#allocation4] sm:$0xff] %vm1520, %v1504
        %1522 = vst.msk [vmem:[#allocation4 + $0x8] sm:$0xff] %vm1520, %v1505
        %1523 = vst.msk [vmem:[#allocation4 + $0x10] sm:$0xff] %vm1520, %v1506
        %1524 = vst.msk [vmem:[#allocation4 + $0x18] sm:$0xff] %vm1520, %v1507
        %1525 = vst.msk [vmem:[#allocation4 + $0x20] sm:$0xff] %vm1520, %v1508
        %1526 = vst.msk [vmem:[#allocation4 + $0x28] sm:$0xff] %vm1520, %v1509
        %1527 = vst.msk [vmem:[#allocation4 + $0x30] sm:$0xff] %vm1520, %v1510
        %1528 = vst.msk [vmem:[#allocation4 + $0x38] sm:$0xff] %vm1520, %v1511
        %1529 = vst.msk [vmem:[#allocation4 + $0x40] sm:$0xff] %vm1520, %v1512
        %1530 = vst.msk [vmem:[#allocation4 + $0x48] sm:$0xff] %vm1520, %v1513
        %1531 = vst.msk [vmem:[#allocation4 + $0x50] sm:$0xff] %vm1520, %v1514
        %1532 = vst.msk [vmem:[#allocation4 + $0x58] sm:$0xff] %vm1520, %v1515
        %1533 = vst.msk [vmem:[#allocation4 + $0x60] sm:$0xff] %vm1520, %v1516
        %1534 = vst.msk [vmem:[#allocation4 + $0x68] sm:$0xff] %vm1520, %v1517
        %1535 = vst.msk [vmem:[#allocation4 + $0x70] sm:$0xff] %vm1520, %v1518
        %1536 = vst.msk [vmem:[#allocation4 + $0x78] sm:$0xff] %vm1520, %v1519
        %v1537 = vld [vmem:[#allocation5] sm:$0xff]
        %v1538 = vld [vmem:[#allocation5 + $0x8] sm:$0xff]
        %v1539 = vld [vmem:[#allocation5 + $0x10] sm:$0xff]
        %v1540 = vld [vmem:[#allocation5 + $0x18] sm:$0xff]
        %v1541 = vld [vmem:[#allocation5 + $0x20] sm:$0xff]
        %v1542 = vld [vmem:[#allocation5 + $0x28] sm:$0xff]
        %v1543 = vld [vmem:[#allocation5 + $0x30] sm:$0xff]
        %v1544 = vld [vmem:[#allocation5 + $0x38] sm:$0xff]
        %v1545 = vld [vmem:[#allocation5 + $0x40] sm:$0xff]
        %v1546 = vld [vmem:[#allocation5 + $0x48] sm:$0xff]
        %v1547 = vld [vmem:[#allocation5 + $0x50] sm:$0xff]
        %v1548 = vld [vmem:[#allocation5 + $0x58] sm:$0xff]
        %v1549 = vld [vmem:[#allocation5 + $0x60] sm:$0xff]
        %v1550 = vld [vmem:[#allocation5 + $0x68] sm:$0xff]
        %v1551 = vld [vmem:[#allocation5 + $0x70] sm:$0xff]
        %v1552 = vld [vmem:[#allocation5 + $0x78] sm:$0xff]
        %1554 = vset.pattern.permute.xlu0 0
        %1555 = vperm.xlu0 %1554, %v1281
        %v1556 = vpop.permute.xlu0 %1555
        %1559 = vset.pattern.permute.xlu0 0
        %1560 = vperm.xlu0 %1559, %v1283
        %v1561 = vpop.permute.xlu0 %1560
        %1564 = vset.pattern.permute.xlu0 0
        %1565 = vperm.xlu0 %1564, %v1285
        %v1566 = vpop.permute.xlu0 %1565
        %1569 = vset.pattern.permute.xlu0 0
        %1570 = vperm.xlu0 %1569, %v1287
        %v1571 = vpop.permute.xlu0 %1570
        %1574 = vset.pattern.permute.xlu0 0
        %1575 = vperm.xlu0 %1574, %v1289
        %v1576 = vpop.permute.xlu0 %1575
        %1579 = vset.pattern.permute.xlu0 0
        %1580 = vperm.xlu0 %1579, %v1291
        %v1581 = vpop.permute.xlu0 %1580
        %1584 = vset.pattern.permute.xlu0 0
        %1585 = vperm.xlu0 %1584, %v1293
        %v1586 = vpop.permute.xlu0 %1585
        %1589 = vset.pattern.permute.xlu0 0
        %1590 = vperm.xlu0 %1589, %v1295
        %v1591 = vpop.permute.xlu0 %1590
        %1594 = vset.pattern.permute.xlu0 0
        %1595 = vperm.xlu0 %1594, %v1297
        %v1596 = vpop.permute.xlu0 %1595
        %1599 = vset.pattern.permute.xlu0 0
        %1600 = vperm.xlu0 %1599, %v1299
        %v1601 = vpop.permute.xlu0 %1600
        %1604 = vset.pattern.permute.xlu0 0
        %1605 = vperm.xlu0 %1604, %v1301
        %v1606 = vpop.permute.xlu0 %1605
        %1609 = vset.pattern.permute.xlu0 0
        %1610 = vperm.xlu0 %1609, %v1303
        %v1611 = vpop.permute.xlu0 %1610
        %1614 = vset.pattern.permute.xlu0 0
        %1615 = vperm.xlu0 %1614, %v1305
        %v1616 = vpop.permute.xlu0 %1615
        %1619 = vset.pattern.permute.xlu0 0
        %1620 = vperm.xlu0 %1619, %v1307
        %v1621 = vpop.permute.xlu0 %1620
        %1624 = vset.pattern.permute.xlu0 0
        %1625 = vperm.xlu0 %1624, %v1309
        %v1626 = vpop.permute.xlu0 %1625
        %1629 = vset.pattern.permute.xlu0 0
        %1630 = vperm.xlu0 %1629, %v1311
        %v1631 = vpop.permute.xlu0 %1630
        %v1633 = vmul.f32 %v1556, %v1537
        %v1634 = vmul.f32 %v1561, %v1538
        %v1635 = vmul.f32 %v1566, %v1539
        %v1636 = vmul.f32 %v1571, %v1540
        %v1637 = vmul.f32 %v1576, %v1541
        %v1638 = vmul.f32 %v1581, %v1542
        %v1639 = vmul.f32 %v1586, %v1543
        %v1640 = vmul.f32 %v1591, %v1544
        %v1641 = vmul.f32 %v1596, %v1545
        %v1642 = vmul.f32 %v1601, %v1546
        %v1643 = vmul.f32 %v1606, %v1547
        %v1644 = vmul.f32 %v1611, %v1548
        %v1645 = vmul.f32 %v1616, %v1549
        %v1646 = vmul.f32 %v1621, %v1550
        %v1647 = vmul.f32 %v1626, %v1551
        %v1648 = vmul.f32 %v1631, %v1552
        %v1649 = vpack.c.bf16 %v1411, %v1409
        %v1650 = vpack.c.bf16 %v1415, %v1413
        %v1651 = vpack.c.bf16 %v1419, %v1417
        %v1652 = vpack.c.bf16 %v1423, %v1421
        %v1653 = vpack.c.bf16 %v1427, %v1425
        %v1654 = vpack.c.bf16 %v1431, %v1429
        %v1655 = vpack.c.bf16 %v1435, %v1433
        %v1656 = vpack.c.bf16 %v1439, %v1437
        %1657 = vmatprep.subr.bf16.mxu0 0
        %1658 = vmatpush1.bf16.msra.mxu0 %v990
        %1659 = vmatprep.subr.bf16.mxu0 0
        %1660 = vmatpush1.bf16.msra.mxu0 %v991
        %1661 = vmatprep.subr.bf16.mxu0 0
        %1662 = vmatpush1.bf16.msra.mxu0 %v992
        %1663 = vmatprep.subr.bf16.mxu0 0
        %1664 = vmatpush1.bf16.msra.mxu0 %v993
        %1665 = vmatprep.subr.bf16.mxu0 0
        %1666 = vmatpush1.bf16.msra.mxu0 %v994
        %1667 = vmatprep.subr.bf16.mxu0 0
        %1668 = vmatpush1.bf16.msra.mxu0 %v995
        %1669 = vmatprep.subr.bf16.mxu0 0
        %1670 = vmatpush1.bf16.msra.mxu0 %v996
        %1671 = vmatprep.subr.bf16.mxu0 0
        %1672 = vmatpush1.bf16.msra.mxu0 %v997
        %1673 = vmatprep.subr.bf16.mxu0 0
        %1674 = vmatpush1.bf16.msra.mxu0 0
        %1675 = vmatprep.subr.bf16.mxu0 0
        %1676 = vmatpush1.bf16.msra.mxu0 0
        %1677 = vmatprep.subr.bf16.mxu0 0
        %1678 = vmatpush1.bf16.msra.mxu0 0
        %1679 = vmatprep.subr.bf16.mxu0 0
        %1680 = vmatpush1.bf16.msra.mxu0 0
        %1681 = vmatprep.subr.bf16.mxu0 0
        %1682 = vmatpush1.bf16.msra.mxu0 0
        %1683 = vmatprep.subr.bf16.mxu0 0
        %1684 = vmatpush1.bf16.msra.mxu0 0
        %1685 = vmatprep.subr.bf16.mxu0 0
        %1686 = vmatpush1.bf16.msra.mxu0 0
        %1687 = vmatprep.subr.bf16.mxu0 0
        %1688 = vmatpush1.bf16.msra.mxu0 0
        %1689 = vmatprep.mubr.bf16.mxu0 0
        %1690 = vmatmul.mubr.bf16.gmra.mrb[0].mxu0 %v1649
        %v1691 = vpop.f32.mrb[0].mxu0
        %v1692 = vadd.f32 0.0, %v1691
        %v1693 = vpop.f32.mrb[0].mxu0
        %v1694 = vpop.f32.mrb[0].mxu0
        %v1695 = vadd.f32 0.0, %v1694
        %v1696 = vpop.f32.mrb[0].mxu0
        %1697 = vmatprep.mubr.bf16.mxu0 0
        %1698 = vmatmul.mubr.bf16.gmra.mrb[0].mxu0 %v1650
        %v1699 = vpop.f32.mrb[0].mxu0
        %v1700 = vadd.f32 0.0, %v1699
        %v1701 = vpop.f32.mrb[0].mxu0
        %v1702 = vpop.f32.mrb[0].mxu0
        %v1703 = vadd.f32 0.0, %v1702
        %v1704 = vpop.f32.mrb[0].mxu0
        %1705 = vmatprep.mubr.bf16.mxu0 0
        %1706 = vmatmul.mubr.bf16.gmra.mrb[0].mxu0 %v1651
        %v1707 = vpop.f32.mrb[0].mxu0
        %v1708 = vadd.f32 0.0, %v1707
        %v1709 = vpop.f32.mrb[0].mxu0
        %v1710 = vpop.f32.mrb[0].mxu0
        %v1711 = vadd.f32 0.0, %v1710
        %v1712 = vpop.f32.mrb[0].mxu0
        %1713 = vmatprep.mubr.bf16.mxu0 0
        %1714 = vmatmul.mubr.bf16.gmra.mrb[0].mxu0 %v1652
        %v1715 = vpop.f32.mrb[0].mxu0
        %v1716 = vadd.f32 0.0, %v1715
        %v1717 = vpop.f32.mrb[0].mxu0
        %v1718 = vpop.f32.mrb[0].mxu0
        %v1719 = vadd.f32 0.0, %v1718
        %v1720 = vpop.f32.mrb[0].mxu0
        %1721 = vmatprep.mubr.bf16.mxu0 0
        %1722 = vmatmul.mubr.bf16.gmra.mrb[0].mxu0 %v1653
        %v1723 = vpop.f32.mrb[0].mxu0
        %v1724 = vadd.f32 0.0, %v1723
        %v1725 = vpop.f32.mrb[0].mxu0
        %v1726 = vpop.f32.mrb[0].mxu0
        %v1727 = vadd.f32 0.0, %v1726
        %v1728 = vpop.f32.mrb[0].mxu0
        %1729 = vmatprep.mubr.bf16.mxu0 0
        %1730 = vmatmul.mubr.bf16.gmra.mrb[0].mxu0 %v1654
        %v1731 = vpop.f32.mrb[0].mxu0
        %v1732 = vadd.f32 0.0, %v1731
        %v1733 = vpop.f32.mrb[0].mxu0
        %v1734 = vpop.f32.mrb[0].mxu0
        %v1735 = vadd.f32 0.0, %v1734
        %v1736 = vpop.f32.mrb[0].mxu0
        %1737 = vmatprep.mubr.bf16.mxu0 0
        %1738 = vmatmul.mubr.bf16.gmra.mrb[0].mxu0 %v1655
        %v1739 = vpop.f32.mrb[0].mxu0
        %v1740 = vadd.f32 0.0, %v1739
        %v1741 = vpop.f32.mrb[0].mxu0
        %v1742 = vpop.f32.mrb[0].mxu0
        %v1743 = vadd.f32 0.0, %v1742
        %v1744 = vpop.f32.mrb[0].mxu0
        %1745 = vmatprep.mubr.bf16.mxu0 0
        %1746 = vmatmul.mubr.bf16.gmra.mrb[0].mxu0 %v1656
        %v1747 = vpop.f32.mrb[0].mxu0
        %v1748 = vadd.f32 0.0, %v1747
        %v1749 = vpop.f32.mrb[0].mxu0
        %v1750 = vpop.f32.mrb[0].mxu0
        %v1751 = vadd.f32 0.0, %v1750
        %v1752 = vpop.f32.mrb[0].mxu0
        %1753 = vdwg.mxu0
        %v1754 = vadd.f32 %v1633, %v1692
        %v1755 = vadd.f32 %v1634, %v1695
        %v1756 = vadd.f32 %v1635, %v1700
        %v1757 = vadd.f32 %v1636, %v1703
        %v1758 = vadd.f32 %v1637, %v1708
        %v1759 = vadd.f32 %v1638, %v1711
        %v1760 = vadd.f32 %v1639, %v1716
        %v1761 = vadd.f32 %v1640, %v1719
        %v1762 = vadd.f32 %v1641, %v1724
        %v1763 = vadd.f32 %v1642, %v1727
        %v1764 = vadd.f32 %v1643, %v1732
        %v1765 = vadd.f32 %v1644, %v1735
        %v1766 = vadd.f32 %v1645, %v1740
        %v1767 = vadd.f32 %v1646, %v1743
        %v1768 = vadd.f32 %v1647, %v1748
        %v1769 = vadd.f32 %v1648, %v1751
        %1770 = vst.msk [vmem:[#allocation5] sm:$0xff] %vm755, %v1754
        %1771 = vst.msk [vmem:[#allocation5 + $0x8] sm:$0xff] %vm755, %v1755
        %1772 = vst.msk [vmem:[#allocation5 + $0x10] sm:$0xff] %vm755, %v1756
        %1773 = vst.msk [vmem:[#allocation5 + $0x18] sm:$0xff] %vm755, %v1757
        %1774 = vst.msk [vmem:[#allocation5 + $0x20] sm:$0xff] %vm755, %v1758
        %1775 = vst.msk [vmem:[#allocation5 + $0x28] sm:$0xff] %vm755, %v1759
        %1776 = vst.msk [vmem:[#allocation5 + $0x30] sm:$0xff] %vm755, %v1760
        %1777 = vst.msk [vmem:[#allocation5 + $0x38] sm:$0xff] %vm755, %v1761
        %1778 = vst.msk [vmem:[#allocation5 + $0x40] sm:$0xff] %vm755, %v1762
        %1779 = vst.msk [vmem:[#allocation5 + $0x48] sm:$0xff] %vm755, %v1763
        %1780 = vst.msk [vmem:[#allocation5 + $0x50] sm:$0xff] %vm755, %v1764
        %1781 = vst.msk [vmem:[#allocation5 + $0x58] sm:$0xff] %vm755, %v1765
        %1782 = vst.msk [vmem:[#allocation5 + $0x60] sm:$0xff] %vm755, %v1766
        %1783 = vst.msk [vmem:[#allocation5 + $0x68] sm:$0xff] %vm755, %v1767
        %1784 = vst.msk [vmem:[#allocation5 + $0x70] sm:$0xff] %vm755, %v1768
        %1785 = vst.msk [vmem:[#allocation5 + $0x78] sm:$0xff] %vm755, %v1769
        %1786 = vst.msk [vmem:[#allocation3] sm:$0xff] %vm1520, %v1248
        %1787 = vst.msk [vmem:[#allocation3 + $0x8] sm:$0xff] %vm1520, %v1249
        %1788 = vst.msk [vmem:[#allocation3 + $0x10] sm:$0xff] %vm1520, %v1250
        %1789 = vst.msk [vmem:[#allocation3 + $0x18] sm:$0xff] %vm1520, %v1251
        %1790 = vst.msk [vmem:[#allocation3 + $0x20] sm:$0xff] %vm1520, %v1252
        %1791 = vst.msk [vmem:[#allocation3 + $0x28] sm:$0xff] %vm1520, %v1253
        %1792 = vst.msk [vmem:[#allocation3 + $0x30] sm:$0xff] %vm1520, %v1254
        %1793 = vst.msk [vmem:[#allocation3 + $0x38] sm:$0xff] %vm1520, %v1255
        %1794 = vst.msk [vmem:[#allocation3 + $0x40] sm:$0xff] %vm1520, %v1256
        %1795 = vst.msk [vmem:[#allocation3 + $0x48] sm:$0xff] %vm1520, %v1257
        %1796 = vst.msk [vmem:[#allocation3 + $0x50] sm:$0xff] %vm1520, %v1258
        %1797 = vst.msk [vmem:[#allocation3 + $0x58] sm:$0xff] %vm1520, %v1259
        %1798 = vst.msk [vmem:[#allocation3 + $0x60] sm:$0xff] %vm1520, %v1260
        %1799 = vst.msk [vmem:[#allocation3 + $0x68] sm:$0xff] %vm1520, %v1261
        %1800 = vst.msk [vmem:[#allocation3 + $0x70] sm:$0xff] %vm1520, %v1262
        %1801 = vst.msk [vmem:[#allocation3 + $0x78] sm:$0xff] %vm1520, %v1263
        %p1802 = scmp.eq.s32.totalorder %s26, 1
        // Predicated region
        $region95: #{tpu_custom_call.1} parent=85 // pred_check
          %p1803 = pneg %p1802
        $region96: #{tpu_custom_call.1} parent=85 // pred_check_branch
          %1805 = sbr.rel (%p1803) target = $region98
        $region97: #{tpu_custom_call.1} parent=85 // pred_region
          %v1806 = vld [vmem:[#allocation5] sm:$0xff]
          %v1807 = vld [vmem:[#allocation5 + $0x8] sm:$0xff]
          %v1808 = vld [vmem:[#allocation5 + $0x10] sm:$0xff]
          %v1809 = vld [vmem:[#allocation5 + $0x18] sm:$0xff]
          %v1810 = vld [vmem:[#allocation5 + $0x20] sm:$0xff]
          %v1811 = vld [vmem:[#allocation5 + $0x28] sm:$0xff]
          %v1812 = vld [vmem:[#allocation5 + $0x30] sm:$0xff]
          %v1813 = vld [vmem:[#allocation5 + $0x38] sm:$0xff]
          %v1814 = vld [vmem:[#allocation5 + $0x40] sm:$0xff]
          %v1815 = vld [vmem:[#allocation5 + $0x48] sm:$0xff]
          %v1816 = vld [vmem:[#allocation5 + $0x50] sm:$0xff]
          %v1817 = vld [vmem:[#allocation5 + $0x58] sm:$0xff]
          %v1818 = vld [vmem:[#allocation5 + $0x60] sm:$0xff]
          %v1819 = vld [vmem:[#allocation5 + $0x68] sm:$0xff]
          %v1820 = vld [vmem:[#allocation5 + $0x70] sm:$0xff]
          %v1821 = vld [vmem:[#allocation5 + $0x78] sm:$0xff]
          %v1822 = vld [vmem:[#allocation4] sm:$0xff]
          %v1823 = vld [vmem:[#allocation4 + $0x8] sm:$0xff]
          %v1824 = vld [vmem:[#allocation4 + $0x10] sm:$0xff]
          %v1825 = vld [vmem:[#allocation4 + $0x18] sm:$0xff]
          %v1826 = vld [vmem:[#allocation4 + $0x20] sm:$0xff]
          %v1827 = vld [vmem:[#allocation4 + $0x28] sm:$0xff]
          %v1828 = vld [vmem:[#allocation4 + $0x30] sm:$0xff]
          %v1829 = vld [vmem:[#allocation4 + $0x38] sm:$0xff]
          %v1830 = vld [vmem:[#allocation4 + $0x40] sm:$0xff]
          %v1831 = vld [vmem:[#allocation4 + $0x48] sm:$0xff]
          %v1832 = vld [vmem:[#allocation4 + $0x50] sm:$0xff]
          %v1833 = vld [vmem:[#allocation4 + $0x58] sm:$0xff]
          %v1834 = vld [vmem:[#allocation4 + $0x60] sm:$0xff]
          %v1835 = vld [vmem:[#allocation4 + $0x68] sm:$0xff]
          %v1836 = vld [vmem:[#allocation4 + $0x70] sm:$0xff]
          %v1837 = vld [vmem:[#allocation4 + $0x78] sm:$0xff]
          %1839 = vset.pattern.permute.xlu0 0
          %1840 = vperm.xlu0 %1839, %v1822
          %v1841 = vpop.permute.xlu0 %1840
          %1844 = vset.pattern.permute.xlu0 0
          %1845 = vperm.xlu0 %1844, %v1823
          %v1846 = vpop.permute.xlu0 %1845
          %1849 = vset.pattern.permute.xlu0 0
          %1850 = vperm.xlu0 %1849, %v1824
          %v1851 = vpop.permute.xlu0 %1850
          %1854 = vset.pattern.permute.xlu0 0
          %1855 = vperm.xlu0 %1854, %v1825
          %v1856 = vpop.permute.xlu0 %1855
          %1859 = vset.pattern.permute.xlu0 0
          %1860 = vperm.xlu0 %1859, %v1826
          %v1861 = vpop.permute.xlu0 %1860
          %1864 = vset.pattern.permute.xlu0 0
          %1865 = vperm.xlu0 %1864, %v1827
          %v1866 = vpop.permute.xlu0 %1865
          %1869 = vset.pattern.permute.xlu0 0
          %1870 = vperm.xlu0 %1869, %v1828
          %v1871 = vpop.permute.xlu0 %1870
          %1874 = vset.pattern.permute.xlu0 0
          %1875 = vperm.xlu0 %1874, %v1829
          %v1876 = vpop.permute.xlu0 %1875
          %1879 = vset.pattern.permute.xlu0 0
          %1880 = vperm.xlu0 %1879, %v1830
          %v1881 = vpop.permute.xlu0 %1880
          %1884 = vset.pattern.permute.xlu0 0
          %1885 = vperm.xlu0 %1884, %v1831
          %v1886 = vpop.permute.xlu0 %1885
          %1889 = vset.pattern.permute.xlu0 0
          %1890 = vperm.xlu0 %1889, %v1832
          %v1891 = vpop.permute.xlu0 %1890
          %1894 = vset.pattern.permute.xlu0 0
          %1895 = vperm.xlu0 %1894, %v1833
          %v1896 = vpop.permute.xlu0 %1895
          %1899 = vset.pattern.permute.xlu0 0
          %1900 = vperm.xlu0 %1899, %v1834
          %v1901 = vpop.permute.xlu0 %1900
          %1904 = vset.pattern.permute.xlu0 0
          %1905 = vperm.xlu0 %1904, %v1835
          %v1906 = vpop.permute.xlu0 %1905
          %1909 = vset.pattern.permute.xlu0 0
          %1910 = vperm.xlu0 %1909, %v1836
          %v1911 = vpop.permute.xlu0 %1910
          %1914 = vset.pattern.permute.xlu0 0
          %1915 = vperm.xlu0 %1914, %v1837
          %v1916 = vpop.permute.xlu0 %1915
          %v1918 = vrcp.pop %v1841
          %v1919 = vmul.f32 %v1806, %v1918
          %v1920 = vrcp.pop %v1846
          %v1921 = vmul.f32 %v1807, %v1920
          %v1922 = vrcp.pop %v1851
          %v1923 = vmul.f32 %v1808, %v1922
          %v1924 = vrcp.pop %v1856
          %v1925 = vmul.f32 %v1809, %v1924
          %v1926 = vrcp.pop %v1861
          %v1927 = vmul.f32 %v1810, %v1926
          %v1928 = vrcp.pop %v1866
          %v1929 = vmul.f32 %v1811, %v1928
          %v1930 = vrcp.pop %v1871
          %v1931 = vmul.f32 %v1812, %v1930
          %v1932 = vrcp.pop %v1876
          %v1933 = vmul.f32 %v1813, %v1932
          %v1934 = vrcp.pop %v1881
          %v1935 = vmul.f32 %v1814, %v1934
          %v1936 = vrcp.pop %v1886
          %v1937 = vmul.f32 %v1815, %v1936
          %v1938 = vrcp.pop %v1891
          %v1939 = vmul.f32 %v1816, %v1938
          %v1940 = vrcp.pop %v1896
          %v1941 = vmul.f32 %v1817, %v1940
          %v1942 = vrcp.pop %v1901
          %v1943 = vmul.f32 %v1818, %v1942
          %v1944 = vrcp.pop %v1906
          %v1945 = vmul.f32 %v1819, %v1944
          %v1946 = vrcp.pop %v1911
          %v1947 = vmul.f32 %v1820, %v1946
          %v1948 = vrcp.pop %v1916
          %v1949 = vmul.f32 %v1821, %v1948
          %v1950 = vpack.c.bf16 %v1921, %v1919
          %v1951 = vpack.c.bf16 %v1925, %v1923
          %v1952 = vpack.c.bf16 %v1929, %v1927
          %v1953 = vpack.c.bf16 %v1933, %v1931
          %v1954 = vpack.c.bf16 %v1937, %v1935
          %v1955 = vpack.c.bf16 %v1941, %v1939
          %v1956 = vpack.c.bf16 %v1945, %v1943
          %v1957 = vpack.c.bf16 %v1949, %v1947
          %v1958 = vld [vmem:[%s6] sm:$0xf]
          %v1959 = vld [vmem:[%s7] sm:$0x1]
          %v1961 = vlaneseq
          %v1962 = vshrl.u32 %v1961, 7
          %v1963 = vsub.s32 0, %v1962
          %v1964 = vrot.slane %v1959, %v1963
          %v1967 = vsel %vm755, %v1950, 0
          %v1970 = vsel %vm755, %v1951, 0
          %v1973 = vsel %vm755, %v1952, 0
          %v1976 = vsel %vm755, %v1953, 0
          %v1979 = vsel %vm755, %v1954, 0
          %v1982 = vsel %vm755, %v1955, 0
          %v1985 = vsel %vm755, %v1956, 0
          %v1988 = vsel %vm755, %v1957, 0
          %v1991 = vsel %vm780, %v1958, 0
          %1993 = vmatprep.subr.bf16.mxu0 0
          %1994 = vmatpush1.bf16.msra.mxu0 %v1991
          %1995 = vmatprep.subr.bf16.mxu0 0
          %1996 = vmatpush1.bf16.msra.mxu0 0
          %1997 = vmatprep.subr.bf16.mxu0 0
          %1998 = vmatpush1.bf16.msra.mxu0 0
          %1999 = vmatprep.subr.bf16.mxu0 0
          %2000 = vmatpush1.bf16.msra.mxu0 0
          %2001 = vmatprep.subr.bf16.mxu0 0
          %2002 = vmatpush1.bf16.msra.mxu0 0
          %2003 = vmatprep.subr.bf16.mxu0 0
          %2004 = vmatpush1.bf16.msra.mxu0 0
          %2005 = vmatprep.subr.bf16.mxu0 0
          %2006 = vmatpush1.bf16.msra.mxu0 0
          %2007 = vmatprep.subr.bf16.mxu0 0
          %2008 = vmatpush1.bf16.msra.mxu0 0
          %2009 = vmatprep.subr.bf16.mxu0 0
          %2010 = vmatpush1.bf16.msra.mxu0 0
          %2011 = vmatprep.subr.bf16.mxu0 0
          %2012 = vmatpush1.bf16.msra.mxu0 0
          %2013 = vmatprep.subr.bf16.mxu0 0
          %2014 = vmatpush1.bf16.msra.mxu0 0
          %2015 = vmatprep.subr.bf16.mxu0 0
          %2016 = vmatpush1.bf16.msra.mxu0 0
          %2017 = vmatprep.subr.bf16.mxu0 0
          %2018 = vmatpush1.bf16.msra.mxu0 0
          %2019 = vmatprep.subr.bf16.mxu0 0
          %2020 = vmatpush1.bf16.msra.mxu0 0
          %2021 = vmatprep.subr.bf16.mxu0 0
          %2022 = vmatpush1.bf16.msra.mxu0 0
          %2023 = vmatprep.subr.bf16.mxu0 0
          %2024 = vmatpush1.bf16.msra.mxu0 0
          %2025 = vmatprep.mubr.bf16.mxu0 0
          %2026 = vmatmul.mubr.bf16.gmra.mrb[0].mxu0 %v1967
          %v2027 = vpop.f32.mrb[0].mxu0
          %v2028 = vadd.f32 %v1964, %v2027
          %v2029 = vpop.f32.mrb[0].mxu0
          %v2030 = vpop.f32.mrb[0].mxu0
          %v2031 = vadd.f32 %v1964, %v2030
          %v2032 = vpop.f32.mrb[0].mxu0
          %2033 = vmatprep.mubr.bf16.mxu0 0
          %2034 = vmatmul.mubr.bf16.gmra.mrb[0].mxu0 %v1970
          %v2035 = vpop.f32.mrb[0].mxu0
          %v2036 = vadd.f32 %v1964, %v2035
          %v2037 = vpop.f32.mrb[0].mxu0
          %v2038 = vpop.f32.mrb[0].mxu0
          %v2039 = vadd.f32 %v1964, %v2038
          %v2040 = vpop.f32.mrb[0].mxu0
          %2041 = vmatprep.mubr.bf16.mxu0 0
          %2042 = vmatmul.mubr.bf16.gmra.mrb[0].mxu0 %v1973
          %v2043 = vpop.f32.mrb[0].mxu0
          %v2044 = vadd.f32 %v1964, %v2043
          %v2045 = vpop.f32.mrb[0].mxu0
          %v2046 = vpop.f32.mrb[0].mxu0
          %v2047 = vadd.f32 %v1964, %v2046
          %v2048 = vpop.f32.mrb[0].mxu0
          %2049 = vmatprep.mubr.bf16.mxu0 0
          %2050 = vmatmul.mubr.bf16.gmra.mrb[0].mxu0 %v1976
          %v2051 = vpop.f32.mrb[0].mxu0
          %v2052 = vadd.f32 %v1964, %v2051
          %v2053 = vpop.f32.mrb[0].mxu0
          %v2054 = vpop.f32.mrb[0].mxu0
          %v2055 = vadd.f32 %v1964, %v2054
          %v2056 = vpop.f32.mrb[0].mxu0
          %2057 = vmatprep.mubr.bf16.mxu0 0
          %2058 = vmatmul.mubr.bf16.gmra.mrb[0].mxu0 %v1979
          %v2059 = vpop.f32.mrb[0].mxu0
          %v2060 = vadd.f32 %v1964, %v2059
          %v2061 = vpop.f32.mrb[0].mxu0
          %v2062 = vpop.f32.mrb[0].mxu0
          %v2063 = vadd.f32 %v1964, %v2062
          %v2064 = vpop.f32.mrb[0].mxu0
          %2065 = vmatprep.mubr.bf16.mxu0 0
          %2066 = vmatmul.mubr.bf16.gmra.mrb[0].mxu0 %v1982
          %v2067 = vpop.f32.mrb[0].mxu0
          %v2068 = vadd.f32 %v1964, %v2067
          %v2069 = vpop.f32.mrb[0].mxu0
          %v2070 = vpop.f32.mrb[0].mxu0
          %v2071 = vadd.f32 %v1964, %v2070
          %v2072 = vpop.f32.mrb[0].mxu0
          %2073 = vmatprep.mubr.bf16.mxu0 0
          %2074 = vmatmul.mubr.bf16.gmra.mrb[0].mxu0 %v1985
          %v2075 = vpop.f32.mrb[0].mxu0
          %v2076 = vadd.f32 %v1964, %v2075
          %v2077 = vpop.f32.mrb[0].mxu0
          %v2078 = vpop.f32.mrb[0].mxu0
          %v2079 = vadd.f32 %v1964, %v2078
          %v2080 = vpop.f32.mrb[0].mxu0
          %2081 = vmatprep.mubr.bf16.mxu0 0
          %2082 = vmatmul.mubr.bf16.gmra.mrb[0].mxu0 %v1988
          %v2083 = vpop.f32.mrb[0].mxu0
          %v2084 = vadd.f32 %v1964, %v2083
          %v2085 = vpop.f32.mrb[0].mxu0
          %v2086 = vpop.f32.mrb[0].mxu0
          %v2087 = vadd.f32 %v1964, %v2086
          %v2088 = vpop.f32.mrb[0].mxu0
          %2089 = vdwg.mxu0
          %v2090 = vld [vmem:[%s485] sm:$0xff]
          %v2091 = vld [vmem:[%s485 + $0x8] sm:$0xff]
          %v2092 = vld [vmem:[%s485 + $0x10] sm:$0xff]
          %v2093 = vld [vmem:[%s485 + $0x18] sm:$0xff]
          %v2094 = vld [vmem:[%s485 + $0x20] sm:$0xff]
          %v2095 = vld [vmem:[%s485 + $0x28] sm:$0xff]
          %v2096 = vld [vmem:[%s485 + $0x30] sm:$0xff]
          %v2097 = vld [vmem:[%s485 + $0x38] sm:$0xff]
          %v2098 = vld [vmem:[%s485 + $0x40] sm:$0xff]
          %v2099 = vld [vmem:[%s485 + $0x48] sm:$0xff]
          %v2100 = vld [vmem:[%s485 + $0x50] sm:$0xff]
          %v2101 = vld [vmem:[%s485 + $0x58] sm:$0xff]
          %v2102 = vld [vmem:[%s485 + $0x60] sm:$0xff]
          %v2103 = vld [vmem:[%s485 + $0x68] sm:$0xff]
          %v2104 = vld [vmem:[%s485 + $0x70] sm:$0xff]
          %v2105 = vld [vmem:[%s485 + $0x78] sm:$0xff]
          %v2106 = vadd.f32 %v2028, %v2090
          %v2107 = vadd.f32 %v2031, %v2091
          %v2108 = vadd.f32 %v2036, %v2092
          %v2109 = vadd.f32 %v2039, %v2093
          %v2110 = vadd.f32 %v2044, %v2094
          %v2111 = vadd.f32 %v2047, %v2095
          %v2112 = vadd.f32 %v2052, %v2096
          %v2113 = vadd.f32 %v2055, %v2097
          %v2114 = vadd.f32 %v2060, %v2098
          %v2115 = vadd.f32 %v2063, %v2099
          %v2116 = vadd.f32 %v2068, %v2100
          %v2117 = vadd.f32 %v2071, %v2101
          %v2118 = vadd.f32 %v2076, %v2102
          %v2119 = vadd.f32 %v2079, %v2103
          %v2120 = vadd.f32 %v2084, %v2104
          %v2121 = vadd.f32 %v2087, %v2105
          %v2122 = vmax.f32 %v2106, 0.0
          %v2123 = vmax.f32 %v2107, 0.0
          %v2124 = vmax.f32 %v2108, 0.0
          %v2125 = vmax.f32 %v2109, 0.0
          %v2126 = vmax.f32 %v2110, 0.0
          %v2127 = vmax.f32 %v2111, 0.0
          %v2128 = vmax.f32 %v2112, 0.0
          %v2129 = vmax.f32 %v2113, 0.0
          %v2130 = vmax.f32 %v2114, 0.0
          %v2131 = vmax.f32 %v2115, 0.0
          %v2132 = vmax.f32 %v2116, 0.0
          %v2133 = vmax.f32 %v2117, 0.0
          %v2134 = vmax.f32 %v2118, 0.0
          %v2135 = vmax.f32 %v2119, 0.0
          %v2136 = vmax.f32 %v2120, 0.0
          %v2137 = vmax.f32 %v2121, 0.0
          %2138 = vst.msk [vmem:[%s506] sm:$0xff] %vm755, %v2122
          %2139 = vst.msk [vmem:[%s506 + $0x8] sm:$0xff] %vm755, %v2123
          %2140 = vst.msk [vmem:[%s506 + $0x10] sm:$0xff] %vm755, %v2124
          %2141 = vst.msk [vmem:[%s506 + $0x18] sm:$0xff] %vm755, %v2125
          %2142 = vst.msk [vmem:[%s506 + $0x20] sm:$0xff] %vm755, %v2126
          %2143 = vst.msk [vmem:[%s506 + $0x28] sm:$0xff] %vm755, %v2127
          %2144 = vst.msk [vmem:[%s506 + $0x30] sm:$0xff] %vm755, %v2128
          %2145 = vst.msk [vmem:[%s506 + $0x38] sm:$0xff] %vm755, %v2129
          %2146 = vst.msk [vmem:[%s506 + $0x40] sm:$0xff] %vm755, %v2130
          %2147 = vst.msk [vmem:[%s506 + $0x48] sm:$0xff] %vm755, %v2131
          %2148 = vst.msk [vmem:[%s506 + $0x50] sm:$0xff] %vm755, %v2132
          %2149 = vst.msk [vmem:[%s506 + $0x58] sm:$0xff] %vm755, %v2133
          %2150 = vst.msk [vmem:[%s506 + $0x60] sm:$0xff] %vm755, %v2134
          %2151 = vst.msk [vmem:[%s506 + $0x68] sm:$0xff] %vm755, %v2135
          %2152 = vst.msk [vmem:[%s506 + $0x70] sm:$0xff] %vm755, %v2136
          %2153 = vst.msk [vmem:[%s506 + $0x78] sm:$0xff] %vm755, %v2137
        $region98: #{tpu_custom_call.1} parent=85 // pred_fallthru
          _
        %s2154 = smul.u32 16, %s25
        %p2155 = scmp.lt.s32.totalorder %s24, 1
        %s2156 = scalar_select %p2155, %s24, 1
        %p2157 = scmp.lt.s32.totalorder %s2154, 31
        %s2158 = scalar_select %p2157, %s2154, 31
        %s2159 = smul.addr %s2156, 32
        %s2160 = sadd.s32 %s2158, %s2159
        %s2161 = smul.addr %s2160, 8
        %s2162 = scalar_lea.vmem %s8, %s2161
        // Predicated region
        $region99: #{tpu_custom_call.1} parent=85 // pred_check
          %p2163 = pneg %p247
        $region100: #{tpu_custom_call.1} parent=85 // pred_check_branch
          %2165 = sbr.rel (%p2163) target = $region102
        $region101: #{tpu_custom_call.1} parent=85 // pred_region
          %s2166 = smul.u32 16, %s25
        $region102: #{tpu_custom_call.1} parent=85 // pred_fallthru
          _
      $region86: #{tpu_custom_call.1} parent=5 // pred_fallthru
        _
      %p2167 = scmp.le.s32.totalorder 2, %s14
      // Predicated region
      $region103: #{tpu_custom_call.1} parent=5 // pred_check
        %p2168 = pneg %p2167
      $region104: #{tpu_custom_call.1} parent=5 // pred_check_branch
        %2170 = sbr.rel (%p2168) target = $region106
      $region105: #{tpu_custom_call.1} parent=5 // pred_region
        %s2171 = ssub.s32 %s14, 2
        // Predicated region
        $region107: #{tpu_custom_call.1} parent=105 // pred_check
          %p2172 = pneg %p253
        $region108: #{tpu_custom_call.1} parent=105 // pred_check_branch
          %2174 = sbr.rel (%p2172) target = $region110
        $region109: #{tpu_custom_call.1} parent=105 // pred_region
          %s2175 = smul.u32 16, %s28
          %p2176 = scmp.lt.s32.totalorder %s27, 1
          %s2177 = scalar_select %p2176, %s27, 1
          %p2178 = scmp.lt.s32.totalorder %s2175, 31
          %s2179 = scalar_select %p2178, %s2175, 31
          %s2180 = smul.addr %s2177, 32
          %s2181 = sadd.s32 %s2179, %s2180
          %s2182 = smul.addr %s2181, 8
          %s2183 = scalar_lea.vmem %s8, %s2182
        $region110: #{tpu_custom_call.1} parent=105 // pred_fallthru
          _
      $region106: #{tpu_custom_call.1} parent=5 // pred_fallthru
        _
    $region6: #{tpu_custom_call.1} parent=1 // loop_footer
      %s18 = sadd.s32 1, %s14
    $region7: #{tpu_custom_call.1} parent=1 // loop_footer_branch
      %13 = sbr.rel target = $region3
    $region8: #{tpu_custom_call.1} parent=1 // loop_exit
      _

</llo_original>
